<compile_context>
chip_gen: v7x
topology: tpu7x:2x2x1
jax: 0.10.0
libtpu: 0.0.40
codegen_flags: <defaults>
</compile_context>

<pallas_src>
import jax
import jax.numpy as jnp
from jax.experimental import pallas as pl
from jax.experimental.pallas import tpu as pltpu


def unimodel_kernel(x_ref, we_ref, be_ref, wd_ref, bd_ref, o_ref):
    # In-kernel f32 -> bf16 cast of the activation tile (hidden under DMA/MXU).
    x = x_ref[...].astype(jnp.bfloat16)

    # Encoder: hidden = relu(x @ We + be)   (bf16 operands, f32 accumulate)
    h = jnp.dot(x, we_ref[...], preferred_element_type=jnp.float32)
    h = jnp.maximum(h + be_ref[...], 0.0)          # bias (1, D_hid) broadcasts

    # Decoder: y = hidden @ Wd + bd
    y = jnp.dot(h.astype(jnp.bfloat16), wd_ref[...],
                preferred_element_type=jnp.float32)
    y = y + bd_ref[...]                            # bias (1, D_in)

    # Numerically-stable sigmoid:
    #   t = exp(-|y|) in (0, 1]  ->  1 + t never overflows
    #   sigmoid(y) = 1/(1+t) if y >= 0 else t/(1+t)
    # exp and the approximate reciprocal both run on the EUP slot.
    t = jnp.exp(-jnp.abs(y))
    inv = pl.reciprocal(1.0 + t, approx=True)
    sig = jnp.where(y >= 0.0, inv, t * inv)

    o_ref[...] = sig.astype(o_ref.dtype)


def prepare_params(w_enc, b_enc, w_dec, b_dec):
    """One-time parameter conversion (call once, outside the per-step path):
    bf16 [in, out] weights for the MXU, f32 (1, D) biases for the f32 epilogue."""
    we_bf = w_enc.astype(jnp.bfloat16)
    wd_bf = w_dec.astype(jnp.bfloat16)
    be2 = b_enc.reshape(1, -1).astype(jnp.float32)
    bd2 = b_dec.reshape(1, -1).astype(jnp.float32)
    return we_bf, be2, wd_bf, bd2


def unimodel_forward(x, we_bf, be2, wd_bf, bd2, *, tile_b=256,
                     out_dtype=jnp.bfloat16):
    B, D_in = x.shape
    D_hid = we_bf.shape[1]
    assert we_bf.shape == (D_in, D_hid)
    assert wd_bf.shape == (D_hid, D_in)
    assert be2.shape == (1, D_hid) and bd2.shape == (1, D_in)

    tile_b = min(tile_b, B)
    grid = (pl.cdiv(B, tile_b),)

    # Constant-index_map blocks: single-buffer (weights DMA'd once, 1x VMEM).
    resident = pl.Buffered(1)

    out_itemsize = jnp.dtype(out_dtype).itemsize
    cost = pl.CostEstimate(
        flops=4 * B * D_in * D_hid,                 # two matmuls
        transcendentals=B * D_in,                   # one exp per output element
        bytes_accessed=(B * D_in * x.dtype.itemsize         # x read
                        + 2 * D_in * D_hid * 2               # both bf16 weights
                        + (D_in + D_hid) * 4                 # biases
                        + B * D_in * out_itemsize),          # output write
    )

    return pl.pallas_call(
        unimodel_kernel,
        out_shape=jax.ShapeDtypeStruct((B, D_in), out_dtype),
        grid_spec=pl.GridSpec(
            grid=grid,
            in_specs=[
                # Activations: tiled over batch, double-buffered by Pallas.
                pl.BlockSpec((tile_b, D_in), lambda i: (i, 0)),
                # Weights / biases: VMEM-resident, DMA'd once, single-buffered.
                pl.BlockSpec((D_in, D_hid), lambda i: (0, 0),
                             pipeline_mode=resident),
                pl.BlockSpec((1, D_hid), lambda i: (0, 0),
                             pipeline_mode=resident),
                pl.BlockSpec((D_hid, D_in), lambda i: (0, 0),
                             pipeline_mode=resident),
                pl.BlockSpec((1, D_in), lambda i: (0, 0),
                             pipeline_mode=resident),
            ],
            out_specs=pl.BlockSpec((tile_b, D_in), lambda i: (i, 0)),
        ),
        compiler_params=pltpu.CompilerParams(
            # Batch tiles are independent -> shard across v7x's 2 TensorCores.
            dimension_semantics=("parallel",),
            # Conservative budget; fits v7x's 64 MiB/core with weights
            # replicated on both cores and leaves headroom.
            vmem_limit_bytes=32 * 1024 * 1024,
        ),
        cost_estimate=cost,
    )(x, we_bf, be2, wd_bf, bd2)


def unimodel_reference(x, w_enc, b_enc, w_dec, b_dec):
    # Pure-JAX reference modelling the same bf16 operand rounding.
    xb = x.astype(jnp.bfloat16).astype(jnp.float32)
    we = w_enc.astype(jnp.bfloat16).astype(jnp.float32)
    wd = w_dec.astype(jnp.bfloat16).astype(jnp.float32)
    h = jnp.maximum(xb @ we + b_enc, 0.0)
    hb = h.astype(jnp.bfloat16).astype(jnp.float32)
    return jax.nn.sigmoid(hb @ wd + b_dec)


if __name__ == "__main__":
    # Dense autoencoder on flattened input. Batch chosen so larger tiles AND
    # the batch grid / megacore sharding are exercised: 2 tiles of 256 rows.
    B, D_in, D_hid = 512, 256, 128
    TILE_B = 256

    key = jax.random.PRNGKey(0)
    k_x, k_we, k_be, k_wd, k_bd = jax.random.split(key, 5)

    x = jax.random.normal(k_x, (B, D_in), dtype=jnp.float32)
    # Deterministic, small-scale parameter init (synthetic; no checkpoint load).
    w_enc = jax.random.normal(k_we, (D_in, D_hid), dtype=jnp.float32) * 0.05
    b_enc = jax.random.normal(k_be, (D_hid,), dtype=jnp.float32) * 0.05
    w_dec = jax.random.normal(k_wd, (D_hid, D_in), dtype=jnp.float32) * 0.05
    b_dec = jax.random.normal(k_bd, (D_in,), dtype=jnp.float32) * 0.05

    # One-time parameter conversion, outside the per-call path.
    params = prepare_params(w_enc, b_enc, w_dec, b_dec)

    out = unimodel_forward(x, *params, tile_b=TILE_B)
    out = jax.block_until_ready(out)

    ref = unimodel_reference(x, w_enc, b_enc, w_dec, b_dec)
    assert out.shape == (B, D_in)
    # Tolerance covers bf16 operand rounding, approx-EUP reciprocal (~2^-12
    # rel), and the bf16 output store (~2^-9 abs on values in (0,1)).
    assert jnp.allclose(out.astype(jnp.float32), ref, atol=1e-2, rtol=1e-2), \
        "mismatch vs reference"

    # TODO(synk): Unimodel.bind() is a no-op in the reference module; nothing to port.
    print("KERNEL_OK")
</pallas_src>

<mosaic_0001>
module attributes {stable_mosaic.version = 11 : i64} {
  func.func @unimodel_kernel(%arg0: i32, %arg1: memref<256x256xf32, #tpu.memory_space<vmem>>, %arg2: memref<256x128xbf16, #tpu.memory_space<vmem>>, %arg3: memref<1x128xf32, #tpu.memory_space<vmem>>, %arg4: memref<128x256xbf16, #tpu.memory_space<vmem>>, %arg5: memref<1x256xf32, #tpu.memory_space<vmem>>, %arg6: memref<256x256xbf16, #tpu.memory_space<vmem>>) attributes {dimension_semantics = [#tpu.dimension_semantics<parallel>], iteration_bounds = array<i64: 2>, scalar_prefetch = 0 : i64, scratch_operands = 0 : i64, tpu.core_type = #tpu.core_type<tc>, window_params = [{transform_indices = @transform_0, window_bounds = array<i64: 256, 256>}, {pipeline_mode = #tpu.pipeline_mode<synchronous>, transform_indices = @transform_1, window_bounds = array<i64: 256, 128>}, {pipeline_mode = #tpu.pipeline_mode<synchronous>, transform_indices = @transform_2, window_bounds = array<i64: 1, 128>}, {pipeline_mode = #tpu.pipeline_mode<synchronous>, transform_indices = @transform_3, window_bounds = array<i64: 128, 256>}, {pipeline_mode = #tpu.pipeline_mode<synchronous>, transform_indices = @transform_4, window_bounds = array<i64: 1, 256>}, {transform_indices = @transform_5, window_bounds = array<i64: 256, 256>}]} {
    %c0 = arith.constant 0 : index
    %c0_0 = arith.constant 0 : index
    %0 = vector.load %arg1[%c0, %c0_0] : memref<256x256xf32, #tpu.memory_space<vmem>>, vector<256x256xf32>
    %1 = arith.truncf %0 : vector<256x256xf32> to vector<256x256xbf16>
    %c0_1 = arith.constant 0 : index
    %c0_2 = arith.constant 0 : index
    %2 = vector.load %arg2[%c0_1, %c0_2] : memref<256x128xbf16, #tpu.memory_space<vmem>>, vector<256x128xbf16>
    %cst = arith.constant dense<0.000000e+00> : vector<256x128xf32>
    %3 = tpu.matmul %1, %2, %cst {dimension_numbers = #tpu.dot_dimension_numbers<[1], [0], [0], [1], [0, 0, 1, 1], [], []>} : vector<256x256xbf16>, vector<256x128xbf16>, vector<256x128xf32> -> vector<256x128xf32>
    %c0_3 = arith.constant 0 : index
    %c0_4 = arith.constant 0 : index
    %4 = vector.load %arg3[%c0_3, %c0_4] : memref<1x128xf32, #tpu.memory_space<vmem>>, vector<1x128xf32>
    %5 = vector.broadcast %4 : vector<1x128xf32> to vector<256x128xf32>
    %6 = arith.addf %3, %5 : vector<256x128xf32>
    %cst_5 = arith.constant 0.000000e+00 : f32
    %7 = vector.broadcast %cst_5 : f32 to vector<256x128xf32>
    %8 = arith.maximumf %6, %7 : vector<256x128xf32>
    %9 = arith.truncf %8 : vector<256x128xf32> to vector<256x128xbf16>
    %c0_6 = arith.constant 0 : index
    %c0_7 = arith.constant 0 : index
    %10 = vector.load %arg4[%c0_6, %c0_7] : memref<128x256xbf16, #tpu.memory_space<vmem>>, vector<128x256xbf16>
    %cst_8 = arith.constant dense<0.000000e+00> : vector<256x256xf32>
    %11 = tpu.matmul %9, %10, %cst_8 {dimension_numbers = #tpu.dot_dimension_numbers<[1], [0], [0], [1], [0, 0, 1, 1], [], []>} : vector<256x128xbf16>, vector<128x256xbf16>, vector<256x256xf32> -> vector<256x256xf32>
    %c0_9 = arith.constant 0 : index
    %c0_10 = arith.constant 0 : index
    %12 = vector.load %arg5[%c0_9, %c0_10] : memref<1x256xf32, #tpu.memory_space<vmem>>, vector<1x256xf32>
    %13 = vector.broadcast %12 : vector<1x256xf32> to vector<256x256xf32>
    %14 = arith.addf %11, %13 : vector<256x256xf32>
    %15 = math.absf %14 : vector<256x256xf32>
    %cst_11 = arith.constant 0.000000e+00 : f32
    %16 = vector.broadcast %cst_11 : f32 to vector<256x256xf32>
    %17 = arith.subf %16, %15 : vector<256x256xf32>
    %18 = math.exp %17 : vector<256x256xf32>
    %cst_12 = arith.constant 1.000000e+00 : f32
    %19 = vector.broadcast %cst_12 : f32 to vector<256x256xf32>
    %20 = arith.addf %19, %18 : vector<256x256xf32>
    %21 = tpu.reciprocal %20 {approx = true} : vector<256x256xf32> -> vector<256x256xf32>
    %cst_13 = arith.constant 0.000000e+00 : f32
    %22 = vector.broadcast %cst_13 : f32 to vector<256x256xf32>
    %23 = arith.cmpf oge, %14, %22 : vector<256x256xf32>
    %24 = arith.mulf %18, %21 : vector<256x256xf32>
    %25 = arith.select %23, %21, %24 : vector<256x256xi1>, vector<256x256xf32>
    %26 = arith.truncf %25 : vector<256x256xf32> to vector<256x256xbf16>
    %c0_14 = arith.constant 0 : index
    %c0_15 = arith.constant 0 : index
    %27 = vector.load %arg6[%c0_14, %c0_15] : memref<256x256xbf16, #tpu.memory_space<vmem>>, vector<256x256xbf16>
    tpu.vector_store %arg6[%c0_14, %c0_15], %26 {strides = array<i32>} : memref<256x256xbf16, #tpu.memory_space<vmem>>, vector<256x256xbf16>,
    return
  }
  func.func @transform_0(%arg0: i32) -> (i32, i32) {
    %c0_i32 = arith.constant 0 : i32
    %c0_i32_0 = arith.constant 0 : i32
    return %arg0, %c0_i32 : i32, i32
  }
  func.func @transform_1(%arg0: i32) -> (i32, i32) {
    %c0_i32 = arith.constant 0 : i32
    %c0_i32_0 = arith.constant 0 : i32
    %c0_i32_1 = arith.constant 0 : i32
    return %c0_i32, %c0_i32_0 : i32, i32
  }
  func.func @transform_2(%arg0: i32) -> (i32, i32) {
    %c0_i32 = arith.constant 0 : i32
    %c0_i32_0 = arith.constant 0 : i32
    %c0_i32_1 = arith.constant 0 : i32
    return %c0_i32, %c0_i32_0 : i32, i32
  }
  func.func @transform_3(%arg0: i32) -> (i32, i32) {
    %c0_i32 = arith.constant 0 : i32
    %c0_i32_0 = arith.constant 0 : i32
    %c0_i32_1 = arith.constant 0 : i32
    return %c0_i32, %c0_i32_0 : i32, i32
  }
  func.func @transform_4(%arg0: i32) -> (i32, i32) {
    %c0_i32 = arith.constant 0 : i32
    %c0_i32_0 = arith.constant 0 : i32
    %c0_i32_1 = arith.constant 0 : i32
    return %c0_i32, %c0_i32_0 : i32, i32
  }
  func.func @transform_5(%arg0: i32) -> (i32, i32) {
    %c0_i32 = arith.constant 0 : i32
    %c0_i32_0 = arith.constant 0 : i32
    return %arg0, %c0_i32 : i32, i32
  }
}

</mosaic_0001>

<llo_original>
// kernel: tpu_custom_call.1
$region0: #{tpu_custom_call.1}
  #allocation0 [shape = 'u32[]', space=smem, size = 0x4, offset = 0x4, fixed_abs, tag = 'smem constant byte address 0x4 - core index']
  #allocation1 [shape = 'u32[144,128]{1,0:T(1,128)}', space=vmem, size = 0x12000, scoped, tag = 'internal scratch']
  %s0 = inlined_call_operand.hbm [shape: f32[512,256], index: 0, kind: input, shape index: {}]
  %s1 = inlined_call_operand.hbm [shape: bf16[256,128], index: 1, kind: input, shape index: {}]
  %s2 = inlined_call_operand.vmem [shape: f32[1,128], index: 2, kind: input, shape index: {}]
  %s3 = inlined_call_operand.hbm [shape: bf16[128,256], index: 3, kind: input, shape index: {}]
  %s4 = inlined_call_operand.vmem [shape: f32[1,256], index: 4, kind: input, shape index: {}]
  %s5 = inlined_call_operand.hbm [shape: bf16[512,256], index: 5, kind: output, shape index: {}]
  %s6 = sld [smem:[#allocation0]]
  $region65: #{tpu_custom_call.1} parent=0
    _
  %s8 = ssub.s32 1, %s6
  %s9 = scalar_select 0, %s8, %s6
  $region1: #{tpu_custom_call.1} parent=0
    #allocation2 [shape = 'u8[524288]{0}', space=vmem, size = 0x80000, scoped, tag = 'input window, operand 0']
    #allocation3 [shape = 's32[2]{0}', space=sflag, size = 0x8, scoped, tag = 'scoped memory for tpu_custom_call.1']
    #allocation4 [shape = 's32[2]{0}', space=sflag, size = 0x8, scoped, tag = 'scoped memory for tpu_custom_call.1']
    #allocation5 [shape = 'u8[65536]{0}', space=vmem, size = 0x10000, scoped, tag = 'input window, operand 1, single buffered']
    #allocation6 [shape = 's32[1]{0}', space=sflag, size = 0x4, scoped, tag = 'scoped memory for tpu_custom_call.1']
    #allocation7 [shape = 'u8[65536]{0}', space=vmem, size = 0x10000, scoped, tag = 'input window, operand 3, single buffered']
    #allocation8 [shape = 'u8[262144]{0}', space=vmem, size = 0x40000, scoped, tag = 'output window, operand 0']
    %10 = vsyncpa [#allocation3], 0
    %s11 = scalar_lea.sflag [#allocation3], 1
    %12 = vsyncpa %s11, 0
    %13 = vsyncpa [#allocation6], 0
    %14 = vsyncpa [#allocation4], 0
    %s15 = scalar_lea.sflag [#allocation4], 1
    %16 = vsyncpa %s15, 0
    loop: start=0, step=1, limit=4
    $region2: #{tpu_custom_call.1} parent=1 // loop_pre_header
      _
    $region3: #{tpu_custom_call.1} parent=1 // loop_header
      %s18 = sphi 0, %s22
      %p19 = scmp.ge.s32.totalorder %s18, 4
      %s28 = sphi 0, %s30
      %s31 = sphi 0, %s28
      %s32 = sphi 0, %s31
      %s48 = sphi 0, %s32
      %s52 = sphi 0, %s52
      %s54 = sphi 0, %s52
      %s55 = sphi 0, %s54
      %s69 = sphi 0, %s55
      %s73 = sphi 0, %s73
      %s75 = sphi 0, %s73
      %s76 = sphi 0, %s75
      %s90 = sphi 0, %s76
      %s94 = sphi 0, %s94
      %s96 = sphi 0, %s94
      %s97 = sphi 0, %s96
      %s111 = sphi 0, %s97
      %s115 = sphi 0, %s115
      %s117 = sphi 0, %s115
      %s118 = sphi 0, %s117
      %s132 = sphi 0, %s118
      %s138 = sphi 0, %s140
      %s141 = sphi 0, %s138
      %s142 = sphi 0, %s141
      %s158 = sphi 0, %s142
    $region4: #{tpu_custom_call.1} parent=1 // loop_header_branch
      %21 = sbr.rel (%p19) target = $region8
    $region5: #{tpu_custom_call.1} parent=1 // loop_body
      %s23 = ssub.s32 %s18, 1
      %s24 = ssub.s32 %s18, 2
      %s25 = sadd.s32 %s18, 1
      %s26 = ssub.s32 %s18, %s25
      %p27 = scmp.eq.s32.totalorder %s26, 0
      %s29 = sadd.s32 %s28, 1
      %s30 = scalar_select %p27, %s28, %s29
      %p33 = pneg %p27
      %p34 = scmp.eq.s32.totalorder %s18, 1
      %p35 = por %p33, %p34
      %p36 = scmp.ne.s32.totalorder %s28, %s31
      %p37 = scmp.eq.s32.totalorder %s18, 0
      %p38 = por %p36, %p37
      %p39 = scmp.ne.s32.totalorder %s28, %s31
      %p40 = scmp.eq.s32.totalorder %s23, 1
      %p41 = por %p39, %p40
      %p42 = scmp.ne.s32.totalorder %s31, %s32
      %p43 = scmp.eq.s32.totalorder %s23, 0
      %p44 = por %p42, %p43
      %p45 = scmp.ne.s32.totalorder %s31, %s32
      %p46 = scmp.eq.s32.totalorder %s24, 1
      %p47 = por %p45, %p46
      %p49 = scmp.ne.s32.totalorder %s32, %s48
      %p50 = scmp.eq.s32.totalorder %s24, 0
      %p51 = por %p49, %p50
      %s53 = sadd.s32 %s52, 1
      %p56 = scmp.eq.s32.totalorder %s18, 1
      %p57 = scmp.ne.s32.totalorder %s52, %s54
      %p58 = scmp.eq.s32.totalorder %s18, 0
      %p59 = por %p57, %p58
      %p60 = scmp.ne.s32.totalorder %s52, %s54
      %p61 = scmp.eq.s32.totalorder %s23, 1
      %p62 = por %p60, %p61
      %p63 = scmp.ne.s32.totalorder %s54, %s55
      %p64 = scmp.eq.s32.totalorder %s23, 0
      %p65 = por %p63, %p64
      %p66 = scmp.ne.s32.totalorder %s54, %s55
      %p67 = scmp.eq.s32.totalorder %s24, 1
      %p68 = por %p66, %p67
      %p70 = scmp.ne.s32.totalorder %s55, %s69
      %p71 = scmp.eq.s32.totalorder %s24, 0
      %p72 = por %p70, %p71
      %s74 = sadd.s32 %s73, 1
      %p77 = scmp.eq.s32.totalorder %s18, 1
      %p78 = scmp.ne.s32.totalorder %s73, %s75
      %p79 = scmp.eq.s32.totalorder %s18, 0
      %p80 = por %p78, %p79
      %p81 = scmp.ne.s32.totalorder %s73, %s75
      %p82 = scmp.eq.s32.totalorder %s23, 1
      %p83 = por %p81, %p82
      %p84 = scmp.ne.s32.totalorder %s75, %s76
      %p85 = scmp.eq.s32.totalorder %s23, 0
      %p86 = por %p84, %p85
      %p87 = scmp.ne.s32.totalorder %s75, %s76
      %p88 = scmp.eq.s32.totalorder %s24, 1
      %p89 = por %p87, %p88
      %p91 = scmp.ne.s32.totalorder %s76, %s90
      %p92 = scmp.eq.s32.totalorder %s24, 0
      %p93 = por %p91, %p92
      %s95 = sadd.s32 %s94, 1
      %p98 = scmp.eq.s32.totalorder %s18, 1
      %p99 = scmp.ne.s32.totalorder %s94, %s96
      %p100 = scmp.eq.s32.totalorder %s18, 0
      %p101 = por %p99, %p100
      %p102 = scmp.ne.s32.totalorder %s94, %s96
      %p103 = scmp.eq.s32.totalorder %s23, 1
      %p104 = por %p102, %p103
      %p105 = scmp.ne.s32.totalorder %s96, %s97
      %p106 = scmp.eq.s32.totalorder %s23, 0
      %p107 = por %p105, %p106
      %p108 = scmp.ne.s32.totalorder %s96, %s97
      %p109 = scmp.eq.s32.totalorder %s24, 1
      %p110 = por %p108, %p109
      %p112 = scmp.ne.s32.totalorder %s97, %s111
      %p113 = scmp.eq.s32.totalorder %s24, 0
      %p114 = por %p112, %p113
      %s116 = sadd.s32 %s115, 1
      %p119 = scmp.eq.s32.totalorder %s18, 1
      %p120 = scmp.ne.s32.totalorder %s115, %s117
      %p121 = scmp.eq.s32.totalorder %s18, 0
      %p122 = por %p120, %p121
      %p123 = scmp.ne.s32.totalorder %s115, %s117
      %p124 = scmp.eq.s32.totalorder %s23, 1
      %p125 = por %p123, %p124
      %p126 = scmp.ne.s32.totalorder %s117, %s118
      %p127 = scmp.eq.s32.totalorder %s23, 0
      %p128 = por %p126, %p127
      %p129 = scmp.ne.s32.totalorder %s117, %s118
      %p130 = scmp.eq.s32.totalorder %s24, 1
      %p131 = por %p129, %p130
      %p133 = scmp.ne.s32.totalorder %s118, %s132
      %p134 = scmp.eq.s32.totalorder %s24, 0
      %p135 = por %p133, %p134
      %s136 = ssub.s32 %s18, %s25
      %p137 = scmp.eq.s32.totalorder %s136, 0
      %s139 = sadd.s32 %s138, 1
      %s140 = scalar_select %p137, %s138, %s139
      %p143 = pneg %p137
      %p144 = scmp.eq.s32.totalorder %s18, 1
      %p145 = por %p143, %p144
      %p146 = scmp.ne.s32.totalorder %s138, %s141
      %p147 = scmp.eq.s32.totalorder %s18, 0
      %p148 = por %p146, %p147
      %p149 = scmp.ne.s32.totalorder %s138, %s141
      %p150 = scmp.eq.s32.totalorder %s23, 1
      %p151 = por %p149, %p150
      %p152 = scmp.ne.s32.totalorder %s141, %s142
      %p153 = scmp.eq.s32.totalorder %s23, 0
      %p154 = por %p152, %p153
      %p155 = scmp.ne.s32.totalorder %s141, %s142
      %p156 = scmp.eq.s32.totalorder %s24, 1
      %p157 = por %p155, %p156
      %p159 = scmp.ne.s32.totalorder %s142, %s158
      %p160 = scmp.eq.s32.totalorder %s24, 0
      %p161 = por %p159, %p160
      %p162 = scmp.le.s32.totalorder 1, %s18
      %p163 = scmp.lt.s32.totalorder %s18, 3
      %p164 = pnand %p162, %p163
      %p165 = pneg %p164
      // Predicated region
      $region9: #{tpu_custom_call.1} parent=5 // pred_check
        _
      $region10: #{tpu_custom_call.1} parent=5 // pred_check_branch
        %167 = sbr.rel (%p164) target = $region12
      $region11: #{tpu_custom_call.1} parent=5 // pred_region
        %s168 = ssub.s32 %s18, 1
        // Predicated region
        $region13: #{tpu_custom_call.1} parent=11 // pred_check
          %p169 = pneg %p65
        $region14: #{tpu_custom_call.1} parent=11 // pred_check_branch
          %171 = sbr.rel (%p169) target = $region16
        $region15: #{tpu_custom_call.1} parent=11 // pred_region
          %s173 = ssub.s32 2048, 2048
          %174 = vsyncadd [#allocation6], %s173
          %s175 = sshll.u32 [#allocation5], 4
          %s176 = int_to_ptr.vmem [resolvable:$true] %s175
          %181 = dma.hbm_to_vmem [thread:$0]  %s1, 2048, %s176, [#allocation6], 64, 64, 4
        $region16: #{tpu_custom_call.1} parent=11 // pred_fallthru
          _
        // Predicated region
        $region17: #{tpu_custom_call.1} parent=11 // pred_check
          %p182 = pneg %p86
        $region18: #{tpu_custom_call.1} parent=11 // pred_check_branch
          %184 = sbr.rel (%p182) target = $region20
        $region19: #{tpu_custom_call.1} parent=11 // pred_region
          _
        $region20: #{tpu_custom_call.1} parent=11 // pred_fallthru
          _
        // Predicated region
        $region21: #{tpu_custom_call.1} parent=11 // pred_check
          %p185 = pneg %p107
        $region22: #{tpu_custom_call.1} parent=11 // pred_check_branch
          %187 = sbr.rel (%p185) target = $region24
        $region23: #{tpu_custom_call.1} parent=11 // pred_region
          %s189 = ssub.s32 2048, 2048
          %190 = vsyncadd [#allocation6], %s189
          %s191 = sshll.u32 [#allocation7], 4
          %s192 = int_to_ptr.vmem [resolvable:$true] %s191
          %197 = dma.hbm_to_vmem [thread:$0]  %s3, 2048, %s192, [#allocation6], 128, 128, 8
        $region24: #{tpu_custom_call.1} parent=11 // pred_fallthru
          _
        // Predicated region
        $region25: #{tpu_custom_call.1} parent=11 // pred_check
          %p198 = pneg %p128
        $region26: #{tpu_custom_call.1} parent=11 // pred_check_branch
          %200 = sbr.rel (%p198) target = $region28
        $region27: #{tpu_custom_call.1} parent=11 // pred_region
          _
        $region28: #{tpu_custom_call.1} parent=11 // pred_fallthru
          _
      $region12: #{tpu_custom_call.1} parent=5 // pred_fallthru
        _
      %p201 = scmp.lt.s32.totalorder %s18, 2
      // Predicated region
      $region29: #{tpu_custom_call.1} parent=5 // pred_check
        %p202 = pneg %p201
      $region30: #{tpu_custom_call.1} parent=5 // pred_check_branch
        %204 = sbr.rel (%p202) target = $region32
      $region31: #{tpu_custom_call.1} parent=5 // pred_region
        // Predicated region
        $region33: #{tpu_custom_call.1} parent=31 // pred_check
          %p205 = pneg %p38
        $region34: #{tpu_custom_call.1} parent=31 // pred_check_branch
          %207 = sbr.rel (%p205) target = $region36
        $region35: #{tpu_custom_call.1} parent=31 // pred_region
          %s208 = sand.u32 %s28, 1
          %s209 = scalar_lea.sflag [#allocation3], %s208
          %s210 = sand.u32 %s28, 1
          %s211 = smul.addr %s210, 512
          %s212 = scalar_lea.vmem [#allocation2], %s211
          %s213 = smul.u32 32, %s18
          %s215 = ssub.s32 8192, 8192
          %216 = vsyncadd %s209, %s215
          %s217 = smul.addr %s213, 2
          %s218 = smul.addr %s217, 128
          %s219 = scalar_lea.hbm %s0, %s218
          %s220 = sshll.u32 %s212, 4
          %s221 = int_to_ptr.vmem [resolvable:$true] %s220
          %226 = dma.hbm_to_vmem [thread:$0]  %s219, 8192, %s221, %s209, 256, 256, 16
        $region36: #{tpu_custom_call.1} parent=31 // pred_fallthru
          _
      $region32: #{tpu_custom_call.1} parent=5 // pred_fallthru
        _
      %p227 = scmp.le.s32.totalorder 1, %s18
      %p228 = scmp.lt.s32.totalorder %s18, 3
      %p229 = pnand %p227, %p228
      %p230 = pneg %p229
      // Predicated region
      $region37: #{tpu_custom_call.1} parent=5 // pred_check
        _
      $region38: #{tpu_custom_call.1} parent=5 // pred_check_branch
        %232 = sbr.rel (%p229) target = $region40
      $region39: #{tpu_custom_call.1} parent=5 // pred_region
        %s233 = ssub.s32 %s18, 1
        %s234 = sand.u32 %s31, 1
        %s235 = scalar_lea.sflag [#allocation3], %s234
        %s236 = sand.u32 %s31, 1
        %s237 = smul.addr %s236, 512
        %s238 = scalar_lea.vmem [#allocation2], %s237
        // Predicated region
        $region41: #{tpu_custom_call.1} parent=39 // pred_check
          %p239 = pneg %p44
        $region42: #{tpu_custom_call.1} parent=39 // pred_check_branch
          %241 = sbr.rel (%p239) target = $region44
        $region43: #{tpu_custom_call.1} parent=39 // pred_region
          %242 = dma.done %s235, 8192
        $region44: #{tpu_custom_call.1} parent=39 // pred_fallthru
          _
        // Predicated region
        $region45: #{tpu_custom_call.1} parent=39 // pred_check
          %p243 = pneg %p65
        $region46: #{tpu_custom_call.1} parent=39 // pred_check_branch
          %245 = sbr.rel (%p243) target = $region48
        $region47: #{tpu_custom_call.1} parent=39 // pred_region
          %246 = dma.done [#allocation6], 2048
        $region48: #{tpu_custom_call.1} parent=39 // pred_fallthru
          _
        // Predicated region
        $region49: #{tpu_custom_call.1} parent=39 // pred_check
          %p247 = pneg %p107
        $region50: #{tpu_custom_call.1} parent=39 // pred_check_branch
          %249 = sbr.rel (%p247) target = $region52
        $region51: #{tpu_custom_call.1} parent=39 // pred_region
          %250 = dma.done [#allocation6], 2048
        $region52: #{tpu_custom_call.1} parent=39 // pred_fallthru
          _
        %s251 = sand.u32 %s31, 1
        %s252 = scalar_lea.sflag [#allocation3], %s251
        %s253 = sand.u32 %s31, 1
        %s254 = smul.addr %s253, 512
        %s255 = scalar_lea.vmem [#allocation2], %s254
        %p256 = pneg %p44
        %p257 = pneg %p41
        %p258 = pneg %p65
        %p259 = pneg %p62
        %p260 = pneg %p86
        %p261 = pneg %p83
        %p262 = pneg %p107
        %p263 = pneg %p104
        %p264 = pneg %p128
        %p265 = pneg %p125
        %p266 = pneg %p154
        %p267 = pneg %p151
        %s268 = sand.u32 %s141, 1
        %s269 = scalar_lea.sflag [#allocation4], %s268
        %s270 = sand.u32 %s141, 1
        %s271 = smul.addr %s270, 256
        %s272 = scalar_lea.vmem [#allocation8], %s271
        %s273 = smul.u32 32, %s23
        %s274 = smul.u32 32, %s23
        %v276 = vld [vmem:[%s238] sm:$0xff]
        %v277 = vld [vmem:[%s238 + $0x8] sm:$0xff]
        %v278 = vld [vmem:[%s238 + $0x10] sm:$0xff]
        %v279 = vld [vmem:[%s238 + $0x18] sm:$0xff]
        %v280 = vld [vmem:[%s238 + $0x20] sm:$0xff]
        %v281 = vld [vmem:[%s238 + $0x28] sm:$0xff]
        %v282 = vld [vmem:[%s238 + $0x30] sm:$0xff]
        %v283 = vld [vmem:[%s238 + $0x38] sm:$0xff]
        %v284 = vld [vmem:[%s238 + $0x40] sm:$0xff]
        %v285 = vld [vmem:[%s238 + $0x48] sm:$0xff]
        %v286 = vld [vmem:[%s238 + $0x50] sm:$0xff]
        %v287 = vld [vmem:[%s238 + $0x58] sm:$0xff]
        %v288 = vld [vmem:[%s238 + $0x60] sm:$0xff]
        %v289 = vld [vmem:[%s238 + $0x68] sm:$0xff]
        %v290 = vld [vmem:[%s238 + $0x70] sm:$0xff]
        %v291 = vld [vmem:[%s238 + $0x78] sm:$0xff]
        %v292 = vld [vmem:[%s238 + $0x80] sm:$0xff]
        %v293 = vld [vmem:[%s238 + $0x88] sm:$0xff]
        %v294 = vld [vmem:[%s238 + $0x90] sm:$0xff]
        %v295 = vld [vmem:[%s238 + $0x98] sm:$0xff]
        %v296 = vld [vmem:[%s238 + $0xa0] sm:$0xff]
        %v297 = vld [vmem:[%s238 + $0xa8] sm:$0xff]
        %v298 = vld [vmem:[%s238 + $0xb0] sm:$0xff]
        %v299 = vld [vmem:[%s238 + $0xb8] sm:$0xff]
        %v300 = vld [vmem:[%s238 + $0xc0] sm:$0xff]
        %v301 = vld [vmem:[%s238 + $0xc8] sm:$0xff]
        %v302 = vld [vmem:[%s238 + $0xd0] sm:$0xff]
        %v303 = vld [vmem:[%s238 + $0xd8] sm:$0xff]
        %v304 = vld [vmem:[%s238 + $0xe0] sm:$0xff]
        %v305 = vld [vmem:[%s238 + $0xe8] sm:$0xff]
        %v306 = vld [vmem:[%s238 + $0xf0] sm:$0xff]
        %v307 = vld [vmem:[%s238 + $0xf8] sm:$0xff]
        %v308 = vld [vmem:[%s238 + $0x100] sm:$0xff]
        %v309 = vld [vmem:[%s238 + $0x108] sm:$0xff]
        %v310 = vld [vmem:[%s238 + $0x110] sm:$0xff]
        %v311 = vld [vmem:[%s238 + $0x118] sm:$0xff]
        %v312 = vld [vmem:[%s238 + $0x120] sm:$0xff]
        %v313 = vld [vmem:[%s238 + $0x128] sm:$0xff]
        %v314 = vld [vmem:[%s238 + $0x130] sm:$0xff]
        %v315 = vld [vmem:[%s238 + $0x138] sm:$0xff]
        %v316 = vld [vmem:[%s238 + $0x140] sm:$0xff]
        %v317 = vld [vmem:[%s238 + $0x148] sm:$0xff]
        %v318 = vld [vmem:[%s238 + $0x150] sm:$0xff]
        %v319 = vld [vmem:[%s238 + $0x158] sm:$0xff]
        %v320 = vld [vmem:[%s238 + $0x160] sm:$0xff]
        %v321 = vld [vmem:[%s238 + $0x168] sm:$0xff]
        %v322 = vld [vmem:[%s238 + $0x170] sm:$0xff]
        %v323 = vld [vmem:[%s238 + $0x178] sm:$0xff]
        %v324 = vld [vmem:[%s238 + $0x180] sm:$0xff]
        %v325 = vld [vmem:[%s238 + $0x188] sm:$0xff]
        %v326 = vld [vmem:[%s238 + $0x190] sm:$0xff]
        %v327 = vld [vmem:[%s238 + $0x198] sm:$0xff]
        %v328 = vld [vmem:[%s238 + $0x1a0] sm:$0xff]
        %v329 = vld [vmem:[%s238 + $0x1a8] sm:$0xff]
        %v330 = vld [vmem:[%s238 + $0x1b0] sm:$0xff]
        %v331 = vld [vmem:[%s238 + $0x1b8] sm:$0xff]
        %v332 = vld [vmem:[%s238 + $0x1c0] sm:$0xff]
        %v333 = vld [vmem:[%s238 + $0x1c8] sm:$0xff]
        %v334 = vld [vmem:[%s238 + $0x1d0] sm:$0xff]
        %v335 = vld [vmem:[%s238 + $0x1d8] sm:$0xff]
        %v336 = vld [vmem:[%s238 + $0x1e0] sm:$0xff]
        %v337 = vld [vmem:[%s238 + $0x1e8] sm:$0xff]
        %v338 = vld [vmem:[%s238 + $0x1f0] sm:$0xff]
        %v339 = vld [vmem:[%s238 + $0x1f8] sm:$0xff]
        %v340 = vpack.c.bf16 %v278, %v276
        %v341 = vpack.c.bf16 %v279, %v277
        %v342 = vpack.c.bf16 %v282, %v280
        %v343 = vpack.c.bf16 %v283, %v281
        %v344 = vpack.c.bf16 %v286, %v284
        %v345 = vpack.c.bf16 %v287, %v285
        %v346 = vpack.c.bf16 %v290, %v288
        %v347 = vpack.c.bf16 %v291, %v289
        %v348 = vpack.c.bf16 %v294, %v292
        %v349 = vpack.c.bf16 %v295, %v293
        %v350 = vpack.c.bf16 %v298, %v296
        %v351 = vpack.c.bf16 %v299, %v297
        %v352 = vpack.c.bf16 %v302, %v300
        %v353 = vpack.c.bf16 %v303, %v301
        %v354 = vpack.c.bf16 %v306, %v304
        %v355 = vpack.c.bf16 %v307, %v305
        %v356 = vpack.c.bf16 %v310, %v308
        %v357 = vpack.c.bf16 %v311, %v309
        %v358 = vpack.c.bf16 %v314, %v312
        %v359 = vpack.c.bf16 %v315, %v313
        %v360 = vpack.c.bf16 %v318, %v316
        %v361 = vpack.c.bf16 %v319, %v317
        %v362 = vpack.c.bf16 %v322, %v320
        %v363 = vpack.c.bf16 %v323, %v321
        %v364 = vpack.c.bf16 %v326, %v324
        %v365 = vpack.c.bf16 %v327, %v325
        %v366 = vpack.c.bf16 %v330, %v328
        %v367 = vpack.c.bf16 %v331, %v329
        %v368 = vpack.c.bf16 %v334, %v332
        %v369 = vpack.c.bf16 %v335, %v333
        %v370 = vpack.c.bf16 %v338, %v336
        %v371 = vpack.c.bf16 %v339, %v337
        %v372 = vld [vmem:[#allocation5] sm:$0xf]
        %v373 = vld [vmem:[#allocation5 + $0x4] sm:$0xf]
        %v374 = vld [vmem:[#allocation5 + $0x8] sm:$0xf]
        %v375 = vld [vmem:[#allocation5 + $0xc] sm:$0xf]
        %v376 = vld [vmem:[#allocation5 + $0x10] sm:$0xf]
        %v377 = vld [vmem:[#allocation5 + $0x14] sm:$0xf]
        %v378 = vld [vmem:[#allocation5 + $0x18] sm:$0xf]
        %v379 = vld [vmem:[#allocation5 + $0x1c] sm:$0xf]
        %v380 = vld [vmem:[#allocation5 + $0x20] sm:$0xf]
        %v381 = vld [vmem:[#allocation5 + $0x24] sm:$0xf]
        %v382 = vld [vmem:[#allocation5 + $0x28] sm:$0xf]
        %v383 = vld [vmem:[#allocation5 + $0x2c] sm:$0xf]
        %v384 = vld [vmem:[#allocation5 + $0x30] sm:$0xf]
        %v385 = vld [vmem:[#allocation5 + $0x34] sm:$0xf]
        %v386 = vld [vmem:[#allocation5 + $0x38] sm:$0xf]
        %v387 = vld [vmem:[#allocation5 + $0x3c] sm:$0xf]
        %v388 = vld [vmem:[#allocation5 + $0x40] sm:$0xf]
        %v389 = vld [vmem:[#allocation5 + $0x44] sm:$0xf]
        %v390 = vld [vmem:[#allocation5 + $0x48] sm:$0xf]
        %v391 = vld [vmem:[#allocation5 + $0x4c] sm:$0xf]
        %v392 = vld [vmem:[#allocation5 + $0x50] sm:$0xf]
        %v393 = vld [vmem:[#allocation5 + $0x54] sm:$0xf]
        %v394 = vld [vmem:[#allocation5 + $0x58] sm:$0xf]
        %v395 = vld [vmem:[#allocation5 + $0x5c] sm:$0xf]
        %v396 = vld [vmem:[#allocation5 + $0x60] sm:$0xf]
        %v397 = vld [vmem:[#allocation5 + $0x64] sm:$0xf]
        %v398 = vld [vmem:[#allocation5 + $0x68] sm:$0xf]
        %v399 = vld [vmem:[#allocation5 + $0x6c] sm:$0xf]
        %v400 = vld [vmem:[#allocation5 + $0x70] sm:$0xf]
        %v401 = vld [vmem:[#allocation5 + $0x74] sm:$0xf]
        %v402 = vld [vmem:[#allocation5 + $0x78] sm:$0xf]
        %v403 = vld [vmem:[#allocation5 + $0x7c] sm:$0xf]
        %v404 = vld [vmem:[%s2] sm:$0x1]
        %v406 = vlaneseq
        %v407 = vshrl.u32 %v406, 7
        %v408 = vsub.s32 0, %v407
        %v409 = vrot.slane %v404, %v408
        %v443 = vunpack.c.l.b16 %v372
        %v444 = vunpack.c.l.b16 %v373
        %v445 = vunpack.c.l.b16 %v374
        %v446 = vunpack.c.l.b16 %v375
        %v447 = vunpack.c.l.b16 %v376
        %v448 = vunpack.c.l.b16 %v377
        %v449 = vunpack.c.l.b16 %v378
        %v450 = vunpack.c.l.b16 %v379
        %v451 = vunpack.c.l.b16 %v380
        %v452 = vunpack.c.l.b16 %v381
        %v453 = vunpack.c.l.b16 %v382
        %v454 = vunpack.c.l.b16 %v383
        %v455 = vunpack.c.l.b16 %v384
        %v456 = vunpack.c.l.b16 %v385
        %v457 = vunpack.c.l.b16 %v386
        %v458 = vunpack.c.l.b16 %v387
        %v459 = vunpack.c.l.b16 %v388
        %v460 = vunpack.c.l.b16 %v389
        %v461 = vunpack.c.l.b16 %v390
        %v462 = vunpack.c.l.b16 %v391
        %v463 = vunpack.c.l.b16 %v392
        %v464 = vunpack.c.l.b16 %v393
        %v465 = vunpack.c.l.b16 %v394
        %v466 = vunpack.c.l.b16 %v395
        %v467 = vunpack.c.l.b16 %v396
        %v468 = vunpack.c.l.b16 %v397
        %v469 = vunpack.c.l.b16 %v398
        %v470 = vunpack.c.l.b16 %v399
        %v471 = vunpack.c.l.b16 %v400
        %v472 = vunpack.c.l.b16 %v401
        %v473 = vunpack.c.l.b16 %v402
        %v474 = vunpack.c.l.b16 %v403
        %v475 = vpack.c.b16 %v444, %v443
        %v476 = vpack.c.b16 %v446, %v445
        %v477 = vpack.c.b16 %v448, %v447
        %v478 = vpack.c.b16 %v450, %v449
        %v479 = vpack.c.b16 %v452, %v451
        %v480 = vpack.c.b16 %v454, %v453
        %v481 = vpack.c.b16 %v456, %v455
        %v482 = vpack.c.b16 %v458, %v457
        %v483 = vpack.c.b16 %v460, %v459
        %v484 = vpack.c.b16 %v462, %v461
        %v485 = vpack.c.b16 %v464, %v463
        %v486 = vpack.c.b16 %v466, %v465
        %v487 = vpack.c.b16 %v468, %v467
        %v488 = vpack.c.b16 %v470, %v469
        %v489 = vpack.c.b16 %v472, %v471
        %v490 = vpack.c.b16 %v474, %v473
        %507 = vmatprep.subr.bf16.mxu0 0
        %508 = vmatpush1.bf16.msra.mxu0 %v475
        %509 = vmatprep.subr.bf16.mxu0 0
        %510 = vmatpush1.bf16.msra.mxu0 %v476
        %511 = vmatprep.subr.bf16.mxu0 0
        %512 = vmatpush1.bf16.msra.mxu0 %v477
        %513 = vmatprep.subr.bf16.mxu0 0
        %514 = vmatpush1.bf16.msra.mxu0 %v478
        %515 = vmatprep.subr.bf16.mxu0 0
        %516 = vmatpush1.bf16.msra.mxu0 %v479
        %517 = vmatprep.subr.bf16.mxu0 0
        %518 = vmatpush1.bf16.msra.mxu0 %v480
        %519 = vmatprep.subr.bf16.mxu0 0
        %520 = vmatpush1.bf16.msra.mxu0 %v481
        %521 = vmatprep.subr.bf16.mxu0 0
        %522 = vmatpush1.bf16.msra.mxu0 %v482
        %523 = vmatprep.subr.bf16.mxu0 0
        %524 = vmatpush1.bf16.msra.mxu0 %v483
        %525 = vmatprep.subr.bf16.mxu0 0
        %526 = vmatpush1.bf16.msra.mxu0 %v484
        %527 = vmatprep.subr.bf16.mxu0 0
        %528 = vmatpush1.bf16.msra.mxu0 %v485
        %529 = vmatprep.subr.bf16.mxu0 0
        %530 = vmatpush1.bf16.msra.mxu0 %v486
        %531 = vmatprep.subr.bf16.mxu0 0
        %532 = vmatpush1.bf16.msra.mxu0 %v487
        %533 = vmatprep.subr.bf16.mxu0 0
        %534 = vmatpush1.bf16.msra.mxu0 %v488
        %535 = vmatprep.subr.bf16.mxu0 0
        %536 = vmatpush1.bf16.msra.mxu0 %v489
        %537 = vmatprep.subr.bf16.mxu0 0
        %538 = vmatpush1.bf16.msra.mxu0 %v490
        %539 = vmatprep.mubr.bf16.mxu0 %v341
        %540 = vmatmul.mubr.bf16.gmra.mrb[0].mxu0 %v340
        %v541 = vpop.f32.mrb[0].mxu0
        %v542 = vadd.f32 %v409, %v541
        %v543 = vpop.f32.mrb[0].mxu0
        %v544 = vpop.f32.mrb[0].mxu0
        %v545 = vadd.f32 %v409, %v544
        %v546 = vpop.f32.mrb[0].mxu0
        %547 = vmatprep.mubr.bf16.mxu0 %v343
        %548 = vmatmul.mubr.bf16.gmra.mrb[0].mxu0 %v342
        %v549 = vpop.f32.mrb[0].mxu0
        %v550 = vadd.f32 %v409, %v549
        %v551 = vpop.f32.mrb[0].mxu0
        %v552 = vpop.f32.mrb[0].mxu0
        %v553 = vadd.f32 %v409, %v552
        %v554 = vpop.f32.mrb[0].mxu0
        %555 = vmatprep.mubr.bf16.mxu0 %v345
        %556 = vmatmul.mubr.bf16.gmra.mrb[0].mxu0 %v344
        %v557 = vpop.f32.mrb[0].mxu0
        %v558 = vadd.f32 %v409, %v557
        %v559 = vpop.f32.mrb[0].mxu0
        %v560 = vpop.f32.mrb[0].mxu0
        %v561 = vadd.f32 %v409, %v560
        %v562 = vpop.f32.mrb[0].mxu0
        %563 = vmatprep.mubr.bf16.mxu0 %v347
        %564 = vmatmul.mubr.bf16.gmra.mrb[0].mxu0 %v346
        %v565 = vpop.f32.mrb[0].mxu0
        %v566 = vadd.f32 %v409, %v565
        %v567 = vpop.f32.mrb[0].mxu0
        %v568 = vpop.f32.mrb[0].mxu0
        %v569 = vadd.f32 %v409, %v568
        %v570 = vpop.f32.mrb[0].mxu0
        %571 = vmatprep.mubr.bf16.mxu0 %v349
        %572 = vmatmul.mubr.bf16.gmra.mrb[0].mxu0 %v348
        %v573 = vpop.f32.mrb[0].mxu0
        %v574 = vadd.f32 %v409, %v573
        %v575 = vpop.f32.mrb[0].mxu0
        %v576 = vpop.f32.mrb[0].mxu0
        %v577 = vadd.f32 %v409, %v576
        %v578 = vpop.f32.mrb[0].mxu0
        %579 = vmatprep.mubr.bf16.mxu0 %v351
        %580 = vmatmul.mubr.bf16.gmra.mrb[0].mxu0 %v350
        %v581 = vpop.f32.mrb[0].mxu0
        %v582 = vadd.f32 %v409, %v581
        %v583 = vpop.f32.mrb[0].mxu0
        %v584 = vpop.f32.mrb[0].mxu0
        %v585 = vadd.f32 %v409, %v584
        %v586 = vpop.f32.mrb[0].mxu0
        %587 = vmatprep.mubr.bf16.mxu0 %v353
        %588 = vmatmul.mubr.bf16.gmra.mrb[0].mxu0 %v352
        %v589 = vpop.f32.mrb[0].mxu0
        %v590 = vadd.f32 %v409, %v589
        %v591 = vpop.f32.mrb[0].mxu0
        %v592 = vpop.f32.mrb[0].mxu0
        %v593 = vadd.f32 %v409, %v592
        %v594 = vpop.f32.mrb[0].mxu0
        %595 = vmatprep.mubr.bf16.mxu0 %v355
        %596 = vmatmul.mubr.bf16.gmra.mrb[0].mxu0 %v354
        %v597 = vpop.f32.mrb[0].mxu0
        %v598 = vadd.f32 %v409, %v597
        %v599 = vpop.f32.mrb[0].mxu0
        %v600 = vpop.f32.mrb[0].mxu0
        %v601 = vadd.f32 %v409, %v600
        %v602 = vpop.f32.mrb[0].mxu0
        %603 = vmatprep.mubr.bf16.mxu0 %v357
        %604 = vmatmul.mubr.bf16.gmra.mrb[0].mxu0 %v356
        %v605 = vpop.f32.mrb[0].mxu0
        %v606 = vadd.f32 %v409, %v605
        %v607 = vpop.f32.mrb[0].mxu0
        %v608 = vpop.f32.mrb[0].mxu0
        %v609 = vadd.f32 %v409, %v608
        %v610 = vpop.f32.mrb[0].mxu0
        %611 = vmatprep.mubr.bf16.mxu0 %v359
        %612 = vmatmul.mubr.bf16.gmra.mrb[0].mxu0 %v358
        %v613 = vpop.f32.mrb[0].mxu0
        %v614 = vadd.f32 %v409, %v613
        %v615 = vpop.f32.mrb[0].mxu0
        %v616 = vpop.f32.mrb[0].mxu0
        %v617 = vadd.f32 %v409, %v616
        %v618 = vpop.f32.mrb[0].mxu0
        %619 = vmatprep.mubr.bf16.mxu0 %v361
        %620 = vmatmul.mubr.bf16.gmra.mrb[0].mxu0 %v360
        %v621 = vpop.f32.mrb[0].mxu0
        %v622 = vadd.f32 %v409, %v621
        %v623 = vpop.f32.mrb[0].mxu0
        %v624 = vpop.f32.mrb[0].mxu0
        %v625 = vadd.f32 %v409, %v624
        %v626 = vpop.f32.mrb[0].mxu0
        %627 = vmatprep.mubr.bf16.mxu0 %v363
        %628 = vmatmul.mubr.bf16.gmra.mrb[0].mxu0 %v362
        %v629 = vpop.f32.mrb[0].mxu0
        %v630 = vadd.f32 %v409, %v629
        %v631 = vpop.f32.mrb[0].mxu0
        %v632 = vpop.f32.mrb[0].mxu0
        %v633 = vadd.f32 %v409, %v632
        %v634 = vpop.f32.mrb[0].mxu0
        %635 = vmatprep.mubr.bf16.mxu0 %v365
        %636 = vmatmul.mubr.bf16.gmra.mrb[0].mxu0 %v364
        %v637 = vpop.f32.mrb[0].mxu0
        %v638 = vadd.f32 %v409, %v637
        %v639 = vpop.f32.mrb[0].mxu0
        %v640 = vpop.f32.mrb[0].mxu0
        %v641 = vadd.f32 %v409, %v640
        %v642 = vpop.f32.mrb[0].mxu0
        %643 = vmatprep.mubr.bf16.mxu0 %v367
        %644 = vmatmul.mubr.bf16.gmra.mrb[0].mxu0 %v366
        %v645 = vpop.f32.mrb[0].mxu0
        %v646 = vadd.f32 %v409, %v645
        %v647 = vpop.f32.mrb[0].mxu0
        %v648 = vpop.f32.mrb[0].mxu0
        %v649 = vadd.f32 %v409, %v648
        %v650 = vpop.f32.mrb[0].mxu0
        %651 = vmatprep.mubr.bf16.mxu0 %v369
        %652 = vmatmul.mubr.bf16.gmra.mrb[0].mxu0 %v368
        %v653 = vpop.f32.mrb[0].mxu0
        %v654 = vadd.f32 %v409, %v653
        %v655 = vpop.f32.mrb[0].mxu0
        %v656 = vpop.f32.mrb[0].mxu0
        %v657 = vadd.f32 %v409, %v656
        %v658 = vpop.f32.mrb[0].mxu0
        %659 = vmatprep.mubr.bf16.mxu0 %v371
        %660 = vmatmul.mubr.bf16.gmra.mrb[0].mxu0 %v370
        %v661 = vpop.f32.mrb[0].mxu0
        %v662 = vadd.f32 %v409, %v661
        %v663 = vpop.f32.mrb[0].mxu0
        %v664 = vpop.f32.mrb[0].mxu0
        %v665 = vadd.f32 %v409, %v664
        %v666 = vpop.f32.mrb[0].mxu0
        %667 = vdwg.mxu0
        %v668 = vmax.f32 %v542, 0.0
        %v669 = vmax.f32 %v545, 0.0
        %v670 = vmax.f32 %v550, 0.0
        %v671 = vmax.f32 %v553, 0.0
        %v672 = vmax.f32 %v558, 0.0
        %v673 = vmax.f32 %v561, 0.0
        %v674 = vmax.f32 %v566, 0.0
        %v675 = vmax.f32 %v569, 0.0
        %v676 = vmax.f32 %v574, 0.0
        %v677 = vmax.f32 %v577, 0.0
        %v678 = vmax.f32 %v582, 0.0
        %v679 = vmax.f32 %v585, 0.0
        %v680 = vmax.f32 %v590, 0.0
        %v681 = vmax.f32 %v593, 0.0
        %v682 = vmax.f32 %v598, 0.0
        %v683 = vmax.f32 %v601, 0.0
        %v684 = vmax.f32 %v606, 0.0
        %v685 = vmax.f32 %v609, 0.0
        %v686 = vmax.f32 %v614, 0.0
        %v687 = vmax.f32 %v617, 0.0
        %v688 = vmax.f32 %v622, 0.0
        %v689 = vmax.f32 %v625, 0.0
        %v690 = vmax.f32 %v630, 0.0
        %v691 = vmax.f32 %v633, 0.0
        %v692 = vmax.f32 %v638, 0.0
        %v693 = vmax.f32 %v641, 0.0
        %v694 = vmax.f32 %v646, 0.0
        %v695 = vmax.f32 %v649, 0.0
        %v696 = vmax.f32 %v654, 0.0
        %v697 = vmax.f32 %v657, 0.0
        %v698 = vmax.f32 %v662, 0.0
        %v699 = vmax.f32 %v665, 0.0
        %v700 = vpack.c.bf16 %v669, %v668
        %v701 = vpack.c.bf16 %v671, %v670
        %v702 = vpack.c.bf16 %v673, %v672
        %v703 = vpack.c.bf16 %v675, %v674
        %v704 = vpack.c.bf16 %v677, %v676
        %v705 = vpack.c.bf16 %v679, %v678
        %v706 = vpack.c.bf16 %v681, %v680
        %v707 = vpack.c.bf16 %v683, %v682
        %v708 = vpack.c.bf16 %v685, %v684
        %v709 = vpack.c.bf16 %v687, %v686
        %v710 = vpack.c.bf16 %v689, %v688
        %v711 = vpack.c.bf16 %v691, %v690
        %v712 = vpack.c.bf16 %v693, %v692
        %v713 = vpack.c.bf16 %v695, %v694
        %v714 = vpack.c.bf16 %v697, %v696
        %v715 = vpack.c.bf16 %v699, %v698
        %v716 = vld [vmem:[#allocation7] sm:$0xff]
        %v717 = vld [vmem:[#allocation7 + $0x8] sm:$0xff]
        %v718 = vld [vmem:[#allocation7 + $0x10] sm:$0xff]
        %v719 = vld [vmem:[#allocation7 + $0x18] sm:$0xff]
        %v720 = vld [vmem:[#allocation7 + $0x20] sm:$0xff]
        %v721 = vld [vmem:[#allocation7 + $0x28] sm:$0xff]
        %v722 = vld [vmem:[#allocation7 + $0x30] sm:$0xff]
        %v723 = vld [vmem:[#allocation7 + $0x38] sm:$0xff]
        %v724 = vld [vmem:[#allocation7 + $0x40] sm:$0xff]
        %v725 = vld [vmem:[#allocation7 + $0x48] sm:$0xff]
        %v726 = vld [vmem:[#allocation7 + $0x50] sm:$0xff]
        %v727 = vld [vmem:[#allocation7 + $0x58] sm:$0xff]
        %v728 = vld [vmem:[#allocation7 + $0x60] sm:$0xff]
        %v729 = vld [vmem:[#allocation7 + $0x68] sm:$0xff]
        %v730 = vld [vmem:[#allocation7 + $0x70] sm:$0xff]
        %v731 = vld [vmem:[#allocation7 + $0x78] sm:$0xff]
        %v732 = vld [vmem:[%s4] sm:$0x3]
        %v734 = vlaneseq
        %v735 = vshrl.u32 %v734, 7
        %v736 = vsub.s32 0, %v735
        %v737 = vrot.slane %v732, %v736
        %v738 = vlaneseq
        %v739 = vshrl.u32 %v738, 7
        %v740 = vsub.s32 1, %v739
        %v741 = vrot.slane %v732, %v740
        %v760 = vunpack.c.l.b16 %v716
        %v761 = vunpack.c.h.b16 %v716
        %v762 = vunpack.c.l.b16 %v717
        %v763 = vunpack.c.h.b16 %v717
        %v764 = vunpack.c.l.b16 %v718
        %v765 = vunpack.c.h.b16 %v718
        %v766 = vunpack.c.l.b16 %v719
        %v767 = vunpack.c.h.b16 %v719
        %v768 = vunpack.c.l.b16 %v720
        %v769 = vunpack.c.h.b16 %v720
        %v770 = vunpack.c.l.b16 %v721
        %v771 = vunpack.c.h.b16 %v721
        %v772 = vunpack.c.l.b16 %v722
        %v773 = vunpack.c.h.b16 %v722
        %v774 = vunpack.c.l.b16 %v723
        %v775 = vunpack.c.h.b16 %v723
        %v776 = vunpack.c.l.b16 %v724
        %v777 = vunpack.c.h.b16 %v724
        %v778 = vunpack.c.l.b16 %v725
        %v779 = vunpack.c.h.b16 %v725
        %v780 = vunpack.c.l.b16 %v726
        %v781 = vunpack.c.h.b16 %v726
        %v782 = vunpack.c.l.b16 %v727
        %v783 = vunpack.c.h.b16 %v727
        %v784 = vunpack.c.l.b16 %v728
        %v785 = vunpack.c.h.b16 %v728
        %v786 = vunpack.c.l.b16 %v729
        %v787 = vunpack.c.h.b16 %v729
        %v788 = vunpack.c.l.b16 %v730
        %v789 = vunpack.c.h.b16 %v730
        %v790 = vunpack.c.l.b16 %v731
        %v791 = vunpack.c.h.b16 %v731
        %v792 = vpack.c.b16 %v762, %v760
        %v793 = vpack.c.b16 %v763, %v761
        %v794 = vpack.c.b16 %v766, %v764
        %v795 = vpack.c.b16 %v767, %v765
        %v796 = vpack.c.b16 %v770, %v768
        %v797 = vpack.c.b16 %v771, %v769
        %v798 = vpack.c.b16 %v774, %v772
        %v799 = vpack.c.b16 %v775, %v773
        %v800 = vpack.c.b16 %v778, %v776
        %v801 = vpack.c.b16 %v779, %v777
        %v802 = vpack.c.b16 %v782, %v780
        %v803 = vpack.c.b16 %v783, %v781
        %v804 = vpack.c.b16 %v786, %v784
        %v805 = vpack.c.b16 %v787, %v785
        %v806 = vpack.c.b16 %v790, %v788
        %v807 = vpack.c.b16 %v791, %v789
        %824 = vmatprep.subr.bf16.mxu0 %v793
        %825 = vmatpush1.bf16.msra.mxu0 %v792
        %826 = vmatprep.subr.bf16.mxu0 %v795
        %827 = vmatpush1.bf16.msra.mxu0 %v794
        %828 = vmatprep.subr.bf16.mxu0 %v797
        %829 = vmatpush1.bf16.msra.mxu0 %v796
        %830 = vmatprep.subr.bf16.mxu0 %v799
        %831 = vmatpush1.bf16.msra.mxu0 %v798
        %832 = vmatprep.subr.bf16.mxu0 %v801
        %833 = vmatpush1.bf16.msra.mxu0 %v800
        %834 = vmatprep.subr.bf16.mxu0 %v803
        %835 = vmatpush1.bf16.msra.mxu0 %v802
        %836 = vmatprep.subr.bf16.mxu0 %v805
        %837 = vmatpush1.bf16.msra.mxu0 %v804
        %838 = vmatprep.subr.bf16.mxu0 %v807
        %839 = vmatpush1.bf16.msra.mxu0 %v806
        %840 = vmatprep.subr.bf16.mxu0 0
        %841 = vmatpush1.bf16.msra.mxu0 0
        %842 = vmatprep.subr.bf16.mxu0 0
        %843 = vmatpush1.bf16.msra.mxu0 0
        %844 = vmatprep.subr.bf16.mxu0 0
        %845 = vmatpush1.bf16.msra.mxu0 0
        %846 = vmatprep.subr.bf16.mxu0 0
        %847 = vmatpush1.bf16.msra.mxu0 0
        %848 = vmatprep.subr.bf16.mxu0 0
        %849 = vmatpush1.bf16.msra.mxu0 0
        %850 = vmatprep.subr.bf16.mxu0 0
        %851 = vmatpush1.bf16.msra.mxu0 0
        %852 = vmatprep.subr.bf16.mxu0 0
        %853 = vmatpush1.bf16.msra.mxu0 0
        %854 = vmatprep.subr.bf16.mxu0 0
        %855 = vmatpush1.bf16.msra.mxu0 0
        %856 = vmatprep.mubr.bf16.mxu0 0
        %857 = vmatmul.mubr.bf16.gmra.mrb[0].mxu0 %v700
        %v858 = vpop.f32.mrb[0].mxu0
        %v859 = vadd.f32 %v737, %v858
        %v860 = vpop.f32.mrb[0].mxu0
        %v861 = vadd.f32 %v741, %v860
        %v862 = vpop.f32.mrb[0].mxu0
        %v863 = vadd.f32 %v737, %v862
        %v864 = vpop.f32.mrb[0].mxu0
        %v865 = vadd.f32 %v741, %v864
        %866 = vmatprep.mubr.bf16.mxu0 0
        %867 = vmatmul.mubr.bf16.gmra.mrb[0].mxu0 %v701
        %v868 = vpop.f32.mrb[0].mxu0
        %v869 = vadd.f32 %v737, %v868
        %v870 = vpop.f32.mrb[0].mxu0
        %v871 = vadd.f32 %v741, %v870
        %v872 = vpop.f32.mrb[0].mxu0
        %v873 = vadd.f32 %v737, %v872
        %v874 = vpop.f32.mrb[0].mxu0
        %v875 = vadd.f32 %v741, %v874
        %876 = vmatprep.mubr.bf16.mxu0 0
        %877 = vmatmul.mubr.bf16.gmra.mrb[0].mxu0 %v702
        %v878 = vpop.f32.mrb[0].mxu0
        %v879 = vadd.f32 %v737, %v878
        %v880 = vpop.f32.mrb[0].mxu0
        %v881 = vadd.f32 %v741, %v880
        %v882 = vpop.f32.mrb[0].mxu0
        %v883 = vadd.f32 %v737, %v882
        %v884 = vpop.f32.mrb[0].mxu0
        %v885 = vadd.f32 %v741, %v884
        %886 = vmatprep.mubr.bf16.mxu0 0
        %887 = vmatmul.mubr.bf16.gmra.mrb[0].mxu0 %v703
        %v888 = vpop.f32.mrb[0].mxu0
        %v889 = vadd.f32 %v737, %v888
        %v890 = vpop.f32.mrb[0].mxu0
        %v891 = vadd.f32 %v741, %v890
        %v892 = vpop.f32.mrb[0].mxu0
        %v893 = vadd.f32 %v737, %v892
        %v894 = vpop.f32.mrb[0].mxu0
        %v895 = vadd.f32 %v741, %v894
        %896 = vmatprep.mubr.bf16.mxu0 0
        %897 = vmatmul.mubr.bf16.gmra.mrb[0].mxu0 %v704
        %v898 = vpop.f32.mrb[0].mxu0
        %v899 = vadd.f32 %v737, %v898
        %v900 = vpop.f32.mrb[0].mxu0
        %v901 = vadd.f32 %v741, %v900
        %v902 = vpop.f32.mrb[0].mxu0
        %v903 = vadd.f32 %v737, %v902
        %v904 = vpop.f32.mrb[0].mxu0
        %v905 = vadd.f32 %v741, %v904
        %906 = vmatprep.mubr.bf16.mxu0 0
        %907 = vmatmul.mubr.bf16.gmra.mrb[0].mxu0 %v705
        %v908 = vpop.f32.mrb[0].mxu0
        %v909 = vadd.f32 %v737, %v908
        %v910 = vpop.f32.mrb[0].mxu0
        %v911 = vadd.f32 %v741, %v910
        %v912 = vpop.f32.mrb[0].mxu0
        %v913 = vadd.f32 %v737, %v912
        %v914 = vpop.f32.mrb[0].mxu0
        %v915 = vadd.f32 %v741, %v914
        %916 = vmatprep.mubr.bf16.mxu0 0
        %917 = vmatmul.mubr.bf16.gmra.mrb[0].mxu0 %v706
        %v918 = vpop.f32.mrb[0].mxu0
        %v919 = vadd.f32 %v737, %v918
        %v920 = vpop.f32.mrb[0].mxu0
        %v921 = vadd.f32 %v741, %v920
        %v922 = vpop.f32.mrb[0].mxu0
        %v923 = vadd.f32 %v737, %v922
        %v924 = vpop.f32.mrb[0].mxu0
        %v925 = vadd.f32 %v741, %v924
        %926 = vmatprep.mubr.bf16.mxu0 0
        %927 = vmatmul.mubr.bf16.gmra.mrb[0].mxu0 %v707
        %v928 = vpop.f32.mrb[0].mxu0
        %v929 = vadd.f32 %v737, %v928
        %v930 = vpop.f32.mrb[0].mxu0
        %v931 = vadd.f32 %v741, %v930
        %v932 = vpop.f32.mrb[0].mxu0
        %v933 = vadd.f32 %v737, %v932
        %v934 = vpop.f32.mrb[0].mxu0
        %v935 = vadd.f32 %v741, %v934
        %936 = vmatprep.mubr.bf16.mxu0 0
        %937 = vmatmul.mubr.bf16.gmra.mrb[0].mxu0 %v708
        %v938 = vpop.f32.mrb[0].mxu0
        %v939 = vadd.f32 %v737, %v938
        %v940 = vpop.f32.mrb[0].mxu0
        %v941 = vadd.f32 %v741, %v940
        %v942 = vpop.f32.mrb[0].mxu0
        %v943 = vadd.f32 %v737, %v942
        %v944 = vpop.f32.mrb[0].mxu0
        %v945 = vadd.f32 %v741, %v944
        %946 = vmatprep.mubr.bf16.mxu0 0
        %947 = vmatmul.mubr.bf16.gmra.mrb[0].mxu0 %v709
        %v948 = vpop.f32.mrb[0].mxu0
        %v949 = vadd.f32 %v737, %v948
        %v950 = vpop.f32.mrb[0].mxu0
        %v951 = vadd.f32 %v741, %v950
        %v952 = vpop.f32.mrb[0].mxu0
        %v953 = vadd.f32 %v737, %v952
        %v954 = vpop.f32.mrb[0].mxu0
        %v955 = vadd.f32 %v741, %v954
        %956 = vmatprep.mubr.bf16.mxu0 0
        %957 = vmatmul.mubr.bf16.gmra.mrb[0].mxu0 %v710
        %v958 = vpop.f32.mrb[0].mxu0
        %v959 = vadd.f32 %v737, %v958
        %v960 = vpop.f32.mrb[0].mxu0
        %v961 = vadd.f32 %v741, %v960
        %v962 = vpop.f32.mrb[0].mxu0
        %v963 = vadd.f32 %v737, %v962
        %v964 = vpop.f32.mrb[0].mxu0
        %v965 = vadd.f32 %v741, %v964
        %966 = vmatprep.mubr.bf16.mxu0 0
        %967 = vmatmul.mubr.bf16.gmra.mrb[0].mxu0 %v711
        %v968 = vpop.f32.mrb[0].mxu0
        %v969 = vadd.f32 %v737, %v968
        %v970 = vpop.f32.mrb[0].mxu0
        %v971 = vadd.f32 %v741, %v970
        %v972 = vpop.f32.mrb[0].mxu0
        %v973 = vadd.f32 %v737, %v972
        %v974 = vpop.f32.mrb[0].mxu0
        %v975 = vadd.f32 %v741, %v974
        %976 = vmatprep.mubr.bf16.mxu0 0
        %977 = vmatmul.mubr.bf16.gmra.mrb[0].mxu0 %v712
        %v978 = vpop.f32.mrb[0].mxu0
        %v979 = vadd.f32 %v737, %v978
        %v980 = vpop.f32.mrb[0].mxu0
        %v981 = vadd.f32 %v741, %v980
        %v982 = vpop.f32.mrb[0].mxu0
        %v983 = vadd.f32 %v737, %v982
        %v984 = vpop.f32.mrb[0].mxu0
        %v985 = vadd.f32 %v741, %v984
        %986 = vmatprep.mubr.bf16.mxu0 0
        %987 = vmatmul.mubr.bf16.gmra.mrb[0].mxu0 %v713
        %v988 = vpop.f32.mrb[0].mxu0
        %v989 = vadd.f32 %v737, %v988
        %v990 = vpop.f32.mrb[0].mxu0
        %v991 = vadd.f32 %v741, %v990
        %v992 = vpop.f32.mrb[0].mxu0
        %v993 = vadd.f32 %v737, %v992
        %v994 = vpop.f32.mrb[0].mxu0
        %v995 = vadd.f32 %v741, %v994
        %996 = vmatprep.mubr.bf16.mxu0 0
        %997 = vmatmul.mubr.bf16.gmra.mrb[0].mxu0 %v714
        %v998 = vpop.f32.mrb[0].mxu0
        %v999 = vadd.f32 %v737, %v998
        %v1000 = vpop.f32.mrb[0].mxu0
        %v1001 = vadd.f32 %v741, %v1000
        %v1002 = vpop.f32.mrb[0].mxu0
        %v1003 = vadd.f32 %v737, %v1002
        %v1004 = vpop.f32.mrb[0].mxu0
        %v1005 = vadd.f32 %v741, %v1004
        %1006 = vmatprep.mubr.bf16.mxu0 0
        %1007 = vmatmul.mubr.bf16.gmra.mrb[0].mxu0 %v715
        %v1008 = vpop.f32.mrb[0].mxu0
        %v1009 = vadd.f32 %v737, %v1008
        %v1010 = vpop.f32.mrb[0].mxu0
        %v1011 = vadd.f32 %v741, %v1010
        %v1012 = vpop.f32.mrb[0].mxu0
        %v1013 = vadd.f32 %v737, %v1012
        %v1014 = vpop.f32.mrb[0].mxu0
        %v1015 = vadd.f32 %v741, %v1014
        %1016 = vdwg.mxu0
        %v1017 = vand.u32 2147483647, %v859
        %v1018 = vand.u32 2147483647, %v861
        %v1019 = vand.u32 2147483647, %v863
        %v1020 = vand.u32 2147483647, %v865
        %v1021 = vand.u32 2147483647, %v869
        %v1022 = vand.u32 2147483647, %v871
        %v1023 = vand.u32 2147483647, %v873
        %v1024 = vand.u32 2147483647, %v875
        %v1025 = vand.u32 2147483647, %v879
        %v1026 = vand.u32 2147483647, %v881
        %v1027 = vand.u32 2147483647, %v883
        %v1028 = vand.u32 2147483647, %v885
        %v1029 = vand.u32 2147483647, %v889
        %v1030 = vand.u32 2147483647, %v891
        %v1031 = vand.u32 2147483647, %v893
        %v1032 = vand.u32 2147483647, %v895
        %v1033 = vand.u32 2147483647, %v899
        %v1034 = vand.u32 2147483647, %v901
        %v1035 = vand.u32 2147483647, %v903
        %v1036 = vand.u32 2147483647, %v905
        %v1037 = vand.u32 2147483647, %v909
        %v1038 = vand.u32 2147483647, %v911
        %v1039 = vand.u32 2147483647, %v913
        %v1040 = vand.u32 2147483647, %v915
        %v1041 = vand.u32 2147483647, %v919
        %v1042 = vand.u32 2147483647, %v921
        %v1043 = vand.u32 2147483647, %v923
        %v1044 = vand.u32 2147483647, %v925
        %v1045 = vand.u32 2147483647, %v929
        %v1046 = vand.u32 2147483647, %v931
        %v1047 = vand.u32 2147483647, %v933
        %v1048 = vand.u32 2147483647, %v935
        %v1049 = vand.u32 2147483647, %v939
        %v1050 = vand.u32 2147483647, %v941
        %v1051 = vand.u32 2147483647, %v943
        %v1052 = vand.u32 2147483647, %v945
        %v1053 = vand.u32 2147483647, %v949
        %v1054 = vand.u32 2147483647, %v951
        %v1055 = vand.u32 2147483647, %v953
        %v1056 = vand.u32 2147483647, %v955
        %v1057 = vand.u32 2147483647, %v959
        %v1058 = vand.u32 2147483647, %v961
        %v1059 = vand.u32 2147483647, %v963
        %v1060 = vand.u32 2147483647, %v965
        %v1061 = vand.u32 2147483647, %v969
        %v1062 = vand.u32 2147483647, %v971
        %v1063 = vand.u32 2147483647, %v973
        %v1064 = vand.u32 2147483647, %v975
        %v1065 = vand.u32 2147483647, %v979
        %v1066 = vand.u32 2147483647, %v981
        %v1067 = vand.u32 2147483647, %v983
        %v1068 = vand.u32 2147483647, %v985
        %v1069 = vand.u32 2147483647, %v989
        %v1070 = vand.u32 2147483647, %v991
        %v1071 = vand.u32 2147483647, %v993
        %v1072 = vand.u32 2147483647, %v995
        %v1073 = vand.u32 2147483647, %v999
        %v1074 = vand.u32 2147483647, %v1001
        %v1075 = vand.u32 2147483647, %v1003
        %v1076 = vand.u32 2147483647, %v1005
        %v1077 = vand.u32 2147483647, %v1009
        %v1078 = vand.u32 2147483647, %v1011
        %v1079 = vand.u32 2147483647, %v1013
        %v1080 = vand.u32 2147483647, %v1015
        %v1081 = vsub.f32 0.0, %v1017
        %v1082 = vsub.f32 0.0, %v1018
        %v1083 = vsub.f32 0.0, %v1019
        %v1084 = vsub.f32 0.0, %v1020
        %v1085 = vsub.f32 0.0, %v1021
        %v1086 = vsub.f32 0.0, %v1022
        %v1087 = vsub.f32 0.0, %v1023
        %v1088 = vsub.f32 0.0, %v1024
        %v1089 = vsub.f32 0.0, %v1025
        %v1090 = vsub.f32 0.0, %v1026
        %v1091 = vsub.f32 0.0, %v1027
        %v1092 = vsub.f32 0.0, %v1028
        %v1093 = vsub.f32 0.0, %v1029
        %v1094 = vsub.f32 0.0, %v1030
        %v1095 = vsub.f32 0.0, %v1031
        %v1096 = vsub.f32 0.0, %v1032
        %v1097 = vsub.f32 0.0, %v1033
        %v1098 = vsub.f32 0.0, %v1034
        %v1099 = vsub.f32 0.0, %v1035
        %v1100 = vsub.f32 0.0, %v1036
        %v1101 = vsub.f32 0.0, %v1037
        %v1102 = vsub.f32 0.0, %v1038
        %v1103 = vsub.f32 0.0, %v1039
        %v1104 = vsub.f32 0.0, %v1040
        %v1105 = vsub.f32 0.0, %v1041
        %v1106 = vsub.f32 0.0, %v1042
        %v1107 = vsub.f32 0.0, %v1043
        %v1108 = vsub.f32 0.0, %v1044
        %v1109 = vsub.f32 0.0, %v1045
        %v1110 = vsub.f32 0.0, %v1046
        %v1111 = vsub.f32 0.0, %v1047
        %v1112 = vsub.f32 0.0, %v1048
        %v1113 = vsub.f32 0.0, %v1049
        %v1114 = vsub.f32 0.0, %v1050
        %v1115 = vsub.f32 0.0, %v1051
        %v1116 = vsub.f32 0.0, %v1052
        %v1117 = vsub.f32 0.0, %v1053
        %v1118 = vsub.f32 0.0, %v1054
        %v1119 = vsub.f32 0.0, %v1055
        %v1120 = vsub.f32 0.0, %v1056
        %v1121 = vsub.f32 0.0, %v1057
        %v1122 = vsub.f32 0.0, %v1058
        %v1123 = vsub.f32 0.0, %v1059
        %v1124 = vsub.f32 0.0, %v1060
        %v1125 = vsub.f32 0.0, %v1061
        %v1126 = vsub.f32 0.0, %v1062
        %v1127 = vsub.f32 0.0, %v1063
        %v1128 = vsub.f32 0.0, %v1064
        %v1129 = vsub.f32 0.0, %v1065
        %v1130 = vsub.f32 0.0, %v1066
        %v1131 = vsub.f32 0.0, %v1067
        %v1132 = vsub.f32 0.0, %v1068
        %v1133 = vsub.f32 0.0, %v1069
        %v1134 = vsub.f32 0.0, %v1070
        %v1135 = vsub.f32 0.0, %v1071
        %v1136 = vsub.f32 0.0, %v1072
        %v1137 = vsub.f32 0.0, %v1073
        %v1138 = vsub.f32 0.0, %v1074
        %v1139 = vsub.f32 0.0, %v1075
        %v1140 = vsub.f32 0.0, %v1076
        %v1141 = vsub.f32 0.0, %v1077
        %v1142 = vsub.f32 0.0, %v1078
        %v1143 = vsub.f32 0.0, %v1079
        %v1144 = vsub.f32 0.0, %v1080
        %v1145 = vmul.f32 %v1081, 1.442695
        %v1146 = vpow.pop %v1145
        %v1147 = vmul.f32 %v1082, 1.442695
        %v1148 = vpow.pop %v1147
        %v1149 = vmul.f32 %v1083, 1.442695
        %v1150 = vpow.pop %v1149
        %v1151 = vmul.f32 %v1084, 1.442695
        %v1152 = vpow.pop %v1151
        %v1153 = vmul.f32 %v1085, 1.442695
        %v1154 = vpow.pop %v1153
        %v1155 = vmul.f32 %v1086, 1.442695
        %v1156 = vpow.pop %v1155
        %v1157 = vmul.f32 %v1087, 1.442695
        %v1158 = vpow.pop %v1157
        %v1159 = vmul.f32 %v1088, 1.442695
        %v1160 = vpow.pop %v1159
        %v1161 = vmul.f32 %v1089, 1.442695
        %v1162 = vpow.pop %v1161
        %v1163 = vmul.f32 %v1090, 1.442695
        %v1164 = vpow.pop %v1163
        %v1165 = vmul.f32 %v1091, 1.442695
        %v1166 = vpow.pop %v1165
        %v1167 = vmul.f32 %v1092, 1.442695
        %v1168 = vpow.pop %v1167
        %v1169 = vmul.f32 %v1093, 1.442695
        %v1170 = vpow.pop %v1169
        %v1171 = vmul.f32 %v1094, 1.442695
        %v1172 = vpow.pop %v1171
        %v1173 = vmul.f32 %v1095, 1.442695
        %v1174 = vpow.pop %v1173
        %v1175 = vmul.f32 %v1096, 1.442695
        %v1176 = vpow.pop %v1175
        %v1177 = vmul.f32 %v1097, 1.442695
        %v1178 = vpow.pop %v1177
        %v1179 = vmul.f32 %v1098, 1.442695
        %v1180 = vpow.pop %v1179
        %v1181 = vmul.f32 %v1099, 1.442695
        %v1182 = vpow.pop %v1181
        %v1183 = vmul.f32 %v1100, 1.442695
        %v1184 = vpow.pop %v1183
        %v1185 = vmul.f32 %v1101, 1.442695
        %v1186 = vpow.pop %v1185
        %v1187 = vmul.f32 %v1102, 1.442695
        %v1188 = vpow.pop %v1187
        %v1189 = vmul.f32 %v1103, 1.442695
        %v1190 = vpow.pop %v1189
        %v1191 = vmul.f32 %v1104, 1.442695
        %v1192 = vpow.pop %v1191
        %v1193 = vmul.f32 %v1105, 1.442695
        %v1194 = vpow.pop %v1193
        %v1195 = vmul.f32 %v1106, 1.442695
        %v1196 = vpow.pop %v1195
        %v1197 = vmul.f32 %v1107, 1.442695
        %v1198 = vpow.pop %v1197
        %v1199 = vmul.f32 %v1108, 1.442695
        %v1200 = vpow.pop %v1199
        %v1201 = vmul.f32 %v1109, 1.442695
        %v1202 = vpow.pop %v1201
        %v1203 = vmul.f32 %v1110, 1.442695
        %v1204 = vpow.pop %v1203
        %v1205 = vmul.f32 %v1111, 1.442695
        %v1206 = vpow.pop %v1205
        %v1207 = vmul.f32 %v1112, 1.442695
        %v1208 = vpow.pop %v1207
        %v1209 = vmul.f32 %v1113, 1.442695
        %v1210 = vpow.pop %v1209
        %v1211 = vmul.f32 %v1114, 1.442695
        %v1212 = vpow.pop %v1211
        %v1213 = vmul.f32 %v1115, 1.442695
        %v1214 = vpow.pop %v1213
        %v1215 = vmul.f32 %v1116, 1.442695
        %v1216 = vpow.pop %v1215
        %v1217 = vmul.f32 %v1117, 1.442695
        %v1218 = vpow.pop %v1217
        %v1219 = vmul.f32 %v1118, 1.442695
        %v1220 = vpow.pop %v1219
        %v1221 = vmul.f32 %v1119, 1.442695
        %v1222 = vpow.pop %v1221
        %v1223 = vmul.f32 %v1120, 1.442695
        %v1224 = vpow.pop %v1223
        %v1225 = vmul.f32 %v1121, 1.442695
        %v1226 = vpow.pop %v1225
        %v1227 = vmul.f32 %v1122, 1.442695
        %v1228 = vpow.pop %v1227
        %v1229 = vmul.f32 %v1123, 1.442695
        %v1230 = vpow.pop %v1229
        %v1231 = vmul.f32 %v1124, 1.442695
        %v1232 = vpow.pop %v1231
        %v1233 = vmul.f32 %v1125, 1.442695
        %v1234 = vpow.pop %v1233
        %v1235 = vmul.f32 %v1126, 1.442695
        %v1236 = vpow.pop %v1235
        %v1237 = vmul.f32 %v1127, 1.442695
        %v1238 = vpow.pop %v1237
        %v1239 = vmul.f32 %v1128, 1.442695
        %v1240 = vpow.pop %v1239
        %v1241 = vmul.f32 %v1129, 1.442695
        %v1242 = vpow.pop %v1241
        %v1243 = vmul.f32 %v1130, 1.442695
        %v1244 = vpow.pop %v1243
        %v1245 = vmul.f32 %v1131, 1.442695
        %v1246 = vpow.pop %v1245
        %v1247 = vmul.f32 %v1132, 1.442695
        %v1248 = vpow.pop %v1247
        %v1249 = vmul.f32 %v1133, 1.442695
        %v1250 = vpow.pop %v1249
        %v1251 = vmul.f32 %v1134, 1.442695
        %v1252 = vpow.pop %v1251
        %v1253 = vmul.f32 %v1135, 1.442695
        %v1254 = vpow.pop %v1253
        %v1255 = vmul.f32 %v1136, 1.442695
        %v1256 = vpow.pop %v1255
        %v1257 = vmul.f32 %v1137, 1.442695
        %v1258 = vpow.pop %v1257
        %v1259 = vmul.f32 %v1138, 1.442695
        %v1260 = vpow.pop %v1259
        %v1261 = vmul.f32 %v1139, 1.442695
        %v1262 = vpow.pop %v1261
        %v1263 = vmul.f32 %v1140, 1.442695
        %v1264 = vpow.pop %v1263
        %v1265 = vmul.f32 %v1141, 1.442695
        %v1266 = vpow.pop %v1265
        %v1267 = vmul.f32 %v1142, 1.442695
        %v1268 = vpow.pop %v1267
        %v1269 = vmul.f32 %v1143, 1.442695
        %v1270 = vpow.pop %v1269
        %v1271 = vmul.f32 %v1144, 1.442695
        %v1272 = vpow.pop %v1271
        %v1273 = vadd.f32 %v1146, 1.0
        %v1274 = vadd.f32 %v1148, 1.0
        %v1275 = vadd.f32 %v1150, 1.0
        %v1276 = vadd.f32 %v1152, 1.0
        %v1277 = vadd.f32 %v1154, 1.0
        %v1278 = vadd.f32 %v1156, 1.0
        %v1279 = vadd.f32 %v1158, 1.0
        %v1280 = vadd.f32 %v1160, 1.0
        %v1281 = vadd.f32 %v1162, 1.0
        %v1282 = vadd.f32 %v1164, 1.0
        %v1283 = vadd.f32 %v1166, 1.0
        %v1284 = vadd.f32 %v1168, 1.0
        %v1285 = vadd.f32 %v1170, 1.0
        %v1286 = vadd.f32 %v1172, 1.0
        %v1287 = vadd.f32 %v1174, 1.0
        %v1288 = vadd.f32 %v1176, 1.0
        %v1289 = vadd.f32 %v1178, 1.0
        %v1290 = vadd.f32 %v1180, 1.0
        %v1291 = vadd.f32 %v1182, 1.0
        %v1292 = vadd.f32 %v1184, 1.0
        %v1293 = vadd.f32 %v1186, 1.0
        %v1294 = vadd.f32 %v1188, 1.0
        %v1295 = vadd.f32 %v1190, 1.0
        %v1296 = vadd.f32 %v1192, 1.0
        %v1297 = vadd.f32 %v1194, 1.0
        %v1298 = vadd.f32 %v1196, 1.0
        %v1299 = vadd.f32 %v1198, 1.0
        %v1300 = vadd.f32 %v1200, 1.0
        %v1301 = vadd.f32 %v1202, 1.0
        %v1302 = vadd.f32 %v1204, 1.0
        %v1303 = vadd.f32 %v1206, 1.0
        %v1304 = vadd.f32 %v1208, 1.0
        %v1305 = vadd.f32 %v1210, 1.0
        %v1306 = vadd.f32 %v1212, 1.0
        %v1307 = vadd.f32 %v1214, 1.0
        %v1308 = vadd.f32 %v1216, 1.0
        %v1309 = vadd.f32 %v1218, 1.0
        %v1310 = vadd.f32 %v1220, 1.0
        %v1311 = vadd.f32 %v1222, 1.0
        %v1312 = vadd.f32 %v1224, 1.0
        %v1313 = vadd.f32 %v1226, 1.0
        %v1314 = vadd.f32 %v1228, 1.0
        %v1315 = vadd.f32 %v1230, 1.0
        %v1316 = vadd.f32 %v1232, 1.0
        %v1317 = vadd.f32 %v1234, 1.0
        %v1318 = vadd.f32 %v1236, 1.0
        %v1319 = vadd.f32 %v1238, 1.0
        %v1320 = vadd.f32 %v1240, 1.0
        %v1321 = vadd.f32 %v1242, 1.0
        %v1322 = vadd.f32 %v1244, 1.0
        %v1323 = vadd.f32 %v1246, 1.0
        %v1324 = vadd.f32 %v1248, 1.0
        %v1325 = vadd.f32 %v1250, 1.0
        %v1326 = vadd.f32 %v1252, 1.0
        %v1327 = vadd.f32 %v1254, 1.0
        %v1328 = vadd.f32 %v1256, 1.0
        %v1329 = vadd.f32 %v1258, 1.0
        %v1330 = vadd.f32 %v1260, 1.0
        %v1331 = vadd.f32 %v1262, 1.0
        %v1332 = vadd.f32 %v1264, 1.0
        %v1333 = vadd.f32 %v1266, 1.0
        %v1334 = vadd.f32 %v1268, 1.0
        %v1335 = vadd.f32 %v1270, 1.0
        %v1336 = vadd.f32 %v1272, 1.0
        %v1337 = vrcp.pop %v1273
        %v1338 = vrcp.pop %v1274
        %v1339 = vrcp.pop %v1275
        %v1340 = vrcp.pop %v1276
        %v1341 = vrcp.pop %v1277
        %v1342 = vrcp.pop %v1278
        %v1343 = vrcp.pop %v1279
        %v1344 = vrcp.pop %v1280
        %v1345 = vrcp.pop %v1281
        %v1346 = vrcp.pop %v1282
        %v1347 = vrcp.pop %v1283
        %v1348 = vrcp.pop %v1284
        %v1349 = vrcp.pop %v1285
        %v1350 = vrcp.pop %v1286
        %v1351 = vrcp.pop %v1287
        %v1352 = vrcp.pop %v1288
        %v1353 = vrcp.pop %v1289
        %v1354 = vrcp.pop %v1290
        %v1355 = vrcp.pop %v1291
        %v1356 = vrcp.pop %v1292
        %v1357 = vrcp.pop %v1293
        %v1358 = vrcp.pop %v1294
        %v1359 = vrcp.pop %v1295
        %v1360 = vrcp.pop %v1296
        %v1361 = vrcp.pop %v1297
        %v1362 = vrcp.pop %v1298
        %v1363 = vrcp.pop %v1299
        %v1364 = vrcp.pop %v1300
        %v1365 = vrcp.pop %v1301
        %v1366 = vrcp.pop %v1302
        %v1367 = vrcp.pop %v1303
        %v1368 = vrcp.pop %v1304
        %v1369 = vrcp.pop %v1305
        %v1370 = vrcp.pop %v1306
        %v1371 = vrcp.pop %v1307
        %v1372 = vrcp.pop %v1308
        %v1373 = vrcp.pop %v1309
        %v1374 = vrcp.pop %v1310
        %v1375 = vrcp.pop %v1311
        %v1376 = vrcp.pop %v1312
        %v1377 = vrcp.pop %v1313
        %v1378 = vrcp.pop %v1314
        %v1379 = vrcp.pop %v1315
        %v1380 = vrcp.pop %v1316
        %v1381 = vrcp.pop %v1317
        %v1382 = vrcp.pop %v1318
        %v1383 = vrcp.pop %v1319
        %v1384 = vrcp.pop %v1320
        %v1385 = vrcp.pop %v1321
        %v1386 = vrcp.pop %v1322
        %v1387 = vrcp.pop %v1323
        %v1388 = vrcp.pop %v1324
        %v1389 = vrcp.pop %v1325
        %v1390 = vrcp.pop %v1326
        %v1391 = vrcp.pop %v1327
        %v1392 = vrcp.pop %v1328
        %v1393 = vrcp.pop %v1329
        %v1394 = vrcp.pop %v1330
        %v1395 = vrcp.pop %v1331
        %v1396 = vrcp.pop %v1332
        %v1397 = vrcp.pop %v1333
        %v1398 = vrcp.pop %v1334
        %v1399 = vrcp.pop %v1335
        %v1400 = vrcp.pop %v1336
        %vm1401 = vcmp.ge.f32.partialorder %v859, 0.0
        %vm1402 = vcmp.ge.f32.partialorder %v861, 0.0
        %vm1403 = vcmp.ge.f32.partialorder %v863, 0.0
        %vm1404 = vcmp.ge.f32.partialorder %v865, 0.0
        %vm1405 = vcmp.ge.f32.partialorder %v869, 0.0
        %vm1406 = vcmp.ge.f32.partialorder %v871, 0.0
        %vm1407 = vcmp.ge.f32.partialorder %v873, 0.0
        %vm1408 = vcmp.ge.f32.partialorder %v875, 0.0
        %vm1409 = vcmp.ge.f32.partialorder %v879, 0.0
        %vm1410 = vcmp.ge.f32.partialorder %v881, 0.0
        %vm1411 = vcmp.ge.f32.partialorder %v883, 0.0
        %vm1412 = vcmp.ge.f32.partialorder %v885, 0.0
        %vm1413 = vcmp.ge.f32.partialorder %v889, 0.0
        %vm1414 = vcmp.ge.f32.partialorder %v891, 0.0
        %vm1415 = vcmp.ge.f32.partialorder %v893, 0.0
        %vm1416 = vcmp.ge.f32.partialorder %v895, 0.0
        %vm1417 = vcmp.ge.f32.partialorder %v899, 0.0
        %vm1418 = vcmp.ge.f32.partialorder %v901, 0.0
        %vm1419 = vcmp.ge.f32.partialorder %v903, 0.0
        %vm1420 = vcmp.ge.f32.partialorder %v905, 0.0
        %vm1421 = vcmp.ge.f32.partialorder %v909, 0.0
        %vm1422 = vcmp.ge.f32.partialorder %v911, 0.0
        %vm1423 = vcmp.ge.f32.partialorder %v913, 0.0
        %vm1424 = vcmp.ge.f32.partialorder %v915, 0.0
        %vm1425 = vcmp.ge.f32.partialorder %v919, 0.0
        %vm1426 = vcmp.ge.f32.partialorder %v921, 0.0
        %vm1427 = vcmp.ge.f32.partialorder %v923, 0.0
        %vm1428 = vcmp.ge.f32.partialorder %v925, 0.0
        %vm1429 = vcmp.ge.f32.partialorder %v929, 0.0
        %vm1430 = vcmp.ge.f32.partialorder %v931, 0.0
        %vm1431 = vcmp.ge.f32.partialorder %v933, 0.0
        %vm1432 = vcmp.ge.f32.partialorder %v935, 0.0
        %vm1433 = vcmp.ge.f32.partialorder %v939, 0.0
        %vm1434 = vcmp.ge.f32.partialorder %v941, 0.0
        %vm1435 = vcmp.ge.f32.partialorder %v943, 0.0
        %vm1436 = vcmp.ge.f32.partialorder %v945, 0.0
        %vm1437 = vcmp.ge.f32.partialorder %v949, 0.0
        %vm1438 = vcmp.ge.f32.partialorder %v951, 0.0
        %vm1439 = vcmp.ge.f32.partialorder %v953, 0.0
        %vm1440 = vcmp.ge.f32.partialorder %v955, 0.0
        %vm1441 = vcmp.ge.f32.partialorder %v959, 0.0
        %vm1442 = vcmp.ge.f32.partialorder %v961, 0.0
        %vm1443 = vcmp.ge.f32.partialorder %v963, 0.0
        %vm1444 = vcmp.ge.f32.partialorder %v965, 0.0
        %vm1445 = vcmp.ge.f32.partialorder %v969, 0.0
        %vm1446 = vcmp.ge.f32.partialorder %v971, 0.0
        %vm1447 = vcmp.ge.f32.partialorder %v973, 0.0
        %vm1448 = vcmp.ge.f32.partialorder %v975, 0.0
        %vm1449 = vcmp.ge.f32.partialorder %v979, 0.0
        %vm1450 = vcmp.ge.f32.partialorder %v981, 0.0
        %vm1451 = vcmp.ge.f32.partialorder %v983, 0.0
        %vm1452 = vcmp.ge.f32.partialorder %v985, 0.0
        %vm1453 = vcmp.ge.f32.partialorder %v989, 0.0
        %vm1454 = vcmp.ge.f32.partialorder %v991, 0.0
        %vm1455 = vcmp.ge.f32.partialorder %v993, 0.0
        %vm1456 = vcmp.ge.f32.partialorder %v995, 0.0
        %vm1457 = vcmp.ge.f32.partialorder %v999, 0.0
        %vm1458 = vcmp.ge.f32.partialorder %v1001, 0.0
        %vm1459 = vcmp.ge.f32.partialorder %v1003, 0.0
        %vm1460 = vcmp.ge.f32.partialorder %v1005, 0.0
        %vm1461 = vcmp.ge.f32.partialorder %v1009, 0.0
        %vm1462 = vcmp.ge.f32.partialorder %v1011, 0.0
        %vm1463 = vcmp.ge.f32.partialorder %v1013, 0.0
        %vm1464 = vcmp.ge.f32.partialorder %v1015, 0.0
        %v1465 = vmul.f32 %v1146, %v1337
        %v1466 = vmul.f32 %v1148, %v1338
        %v1467 = vmul.f32 %v1150, %v1339
        %v1468 = vmul.f32 %v1152, %v1340
        %v1469 = vmul.f32 %v1154, %v1341
        %v1470 = vmul.f32 %v1156, %v1342
        %v1471 = vmul.f32 %v1158, %v1343
        %v1472 = vmul.f32 %v1160, %v1344
        %v1473 = vmul.f32 %v1162, %v1345
        %v1474 = vmul.f32 %v1164, %v1346
        %v1475 = vmul.f32 %v1166, %v1347
        %v1476 = vmul.f32 %v1168, %v1348
        %v1477 = vmul.f32 %v1170, %v1349
        %v1478 = vmul.f32 %v1172, %v1350
        %v1479 = vmul.f32 %v1174, %v1351
        %v1480 = vmul.f32 %v1176, %v1352
        %v1481 = vmul.f32 %v1178, %v1353
        %v1482 = vmul.f32 %v1180, %v1354
        %v1483 = vmul.f32 %v1182, %v1355
        %v1484 = vmul.f32 %v1184, %v1356
        %v1485 = vmul.f32 %v1186, %v1357
        %v1486 = vmul.f32 %v1188, %v1358
        %v1487 = vmul.f32 %v1190, %v1359
        %v1488 = vmul.f32 %v1192, %v1360
        %v1489 = vmul.f32 %v1194, %v1361
        %v1490 = vmul.f32 %v1196, %v1362
        %v1491 = vmul.f32 %v1198, %v1363
        %v1492 = vmul.f32 %v1200, %v1364
        %v1493 = vmul.f32 %v1202, %v1365
        %v1494 = vmul.f32 %v1204, %v1366
        %v1495 = vmul.f32 %v1206, %v1367
        %v1496 = vmul.f32 %v1208, %v1368
        %v1497 = vmul.f32 %v1210, %v1369
        %v1498 = vmul.f32 %v1212, %v1370
        %v1499 = vmul.f32 %v1214, %v1371
        %v1500 = vmul.f32 %v1216, %v1372
        %v1501 = vmul.f32 %v1218, %v1373
        %v1502 = vmul.f32 %v1220, %v1374
        %v1503 = vmul.f32 %v1222, %v1375
        %v1504 = vmul.f32 %v1224, %v1376
        %v1505 = vmul.f32 %v1226, %v1377
        %v1506 = vmul.f32 %v1228, %v1378
        %v1507 = vmul.f32 %v1230, %v1379
        %v1508 = vmul.f32 %v1232, %v1380
        %v1509 = vmul.f32 %v1234, %v1381
        %v1510 = vmul.f32 %v1236, %v1382
        %v1511 = vmul.f32 %v1238, %v1383
        %v1512 = vmul.f32 %v1240, %v1384
        %v1513 = vmul.f32 %v1242, %v1385
        %v1514 = vmul.f32 %v1244, %v1386
        %v1515 = vmul.f32 %v1246, %v1387
        %v1516 = vmul.f32 %v1248, %v1388
        %v1517 = vmul.f32 %v1250, %v1389
        %v1518 = vmul.f32 %v1252, %v1390
        %v1519 = vmul.f32 %v1254, %v1391
        %v1520 = vmul.f32 %v1256, %v1392
        %v1521 = vmul.f32 %v1258, %v1393
        %v1522 = vmul.f32 %v1260, %v1394
        %v1523 = vmul.f32 %v1262, %v1395
        %v1524 = vmul.f32 %v1264, %v1396
        %v1525 = vmul.f32 %v1266, %v1397
        %v1526 = vmul.f32 %v1268, %v1398
        %v1527 = vmul.f32 %v1270, %v1399
        %v1528 = vmul.f32 %v1272, %v1400
        %v1529 = vsel %vm1401, %v1337, %v1465
        %v1530 = vsel %vm1402, %v1338, %v1466
        %v1531 = vsel %vm1403, %v1339, %v1467
        %v1532 = vsel %vm1404, %v1340, %v1468
        %v1533 = vsel %vm1405, %v1341, %v1469
        %v1534 = vsel %vm1406, %v1342, %v1470
        %v1535 = vsel %vm1407, %v1343, %v1471
        %v1536 = vsel %vm1408, %v1344, %v1472
        %v1537 = vsel %vm1409, %v1345, %v1473
        %v1538 = vsel %vm1410, %v1346, %v1474
        %v1539 = vsel %vm1411, %v1347, %v1475
        %v1540 = vsel %vm1412, %v1348, %v1476
        %v1541 = vsel %vm1413, %v1349, %v1477
        %v1542 = vsel %vm1414, %v1350, %v1478
        %v1543 = vsel %vm1415, %v1351, %v1479
        %v1544 = vsel %vm1416, %v1352, %v1480
        %v1545 = vsel %vm1417, %v1353, %v1481
        %v1546 = vsel %vm1418, %v1354, %v1482
        %v1547 = vsel %vm1419, %v1355, %v1483
        %v1548 = vsel %vm1420, %v1356, %v1484
        %v1549 = vsel %vm1421, %v1357, %v1485
        %v1550 = vsel %vm1422, %v1358, %v1486
        %v1551 = vsel %vm1423, %v1359, %v1487
        %v1552 = vsel %vm1424, %v1360, %v1488
        %v1553 = vsel %vm1425, %v1361, %v1489
        %v1554 = vsel %vm1426, %v1362, %v1490
        %v1555 = vsel %vm1427, %v1363, %v1491
        %v1556 = vsel %vm1428, %v1364, %v1492
        %v1557 = vsel %vm1429, %v1365, %v1493
        %v1558 = vsel %vm1430, %v1366, %v1494
        %v1559 = vsel %vm1431, %v1367, %v1495
        %v1560 = vsel %vm1432, %v1368, %v1496
        %v1561 = vsel %vm1433, %v1369, %v1497
        %v1562 = vsel %vm1434, %v1370, %v1498
        %v1563 = vsel %vm1435, %v1371, %v1499
        %v1564 = vsel %vm1436, %v1372, %v1500
        %v1565 = vsel %vm1437, %v1373, %v1501
        %v1566 = vsel %vm1438, %v1374, %v1502
        %v1567 = vsel %vm1439, %v1375, %v1503
        %v1568 = vsel %vm1440, %v1376, %v1504
        %v1569 = vsel %vm1441, %v1377, %v1505
        %v1570 = vsel %vm1442, %v1378, %v1506
        %v1571 = vsel %vm1443, %v1379, %v1507
        %v1572 = vsel %vm1444, %v1380, %v1508
        %v1573 = vsel %vm1445, %v1381, %v1509
        %v1574 = vsel %vm1446, %v1382, %v1510
        %v1575 = vsel %vm1447, %v1383, %v1511
        %v1576 = vsel %vm1448, %v1384, %v1512
        %v1577 = vsel %vm1449, %v1385, %v1513
        %v1578 = vsel %vm1450, %v1386, %v1514
        %v1579 = vsel %vm1451, %v1387, %v1515
        %v1580 = vsel %vm1452, %v1388, %v1516
        %v1581 = vsel %vm1453, %v1389, %v1517
        %v1582 = vsel %vm1454, %v1390, %v1518
        %v1583 = vsel %vm1455, %v1391, %v1519
        %v1584 = vsel %vm1456, %v1392, %v1520
        %v1585 = vsel %vm1457, %v1393, %v1521
        %v1586 = vsel %vm1458, %v1394, %v1522
        %v1587 = vsel %vm1459, %v1395, %v1523
        %v1588 = vsel %vm1460, %v1396, %v1524
        %v1589 = vsel %vm1461, %v1397, %v1525
        %v1590 = vsel %vm1462, %v1398, %v1526
        %v1591 = vsel %vm1463, %v1399, %v1527
        %v1592 = vsel %vm1464, %v1400, %v1528
        %v1593 = vpack.c.bf16 %v1531, %v1529
        %v1594 = vpack.c.bf16 %v1532, %v1530
        %v1595 = vpack.c.bf16 %v1535, %v1533
        %v1596 = vpack.c.bf16 %v1536, %v1534
        %v1597 = vpack.c.bf16 %v1539, %v1537
        %v1598 = vpack.c.bf16 %v1540, %v1538
        %v1599 = vpack.c.bf16 %v1543, %v1541
        %v1600 = vpack.c.bf16 %v1544, %v1542
        %v1601 = vpack.c.bf16 %v1547, %v1545
        %v1602 = vpack.c.bf16 %v1548, %v1546
        %v1603 = vpack.c.bf16 %v1551, %v1549
        %v1604 = vpack.c.bf16 %v1552, %v1550
        %v1605 = vpack.c.bf16 %v1555, %v1553
        %v1606 = vpack.c.bf16 %v1556, %v1554
        %v1607 = vpack.c.bf16 %v1559, %v1557
        %v1608 = vpack.c.bf16 %v1560, %v1558
        %v1609 = vpack.c.bf16 %v1563, %v1561
        %v1610 = vpack.c.bf16 %v1564, %v1562
        %v1611 = vpack.c.bf16 %v1567, %v1565
        %v1612 = vpack.c.bf16 %v1568, %v1566
        %v1613 = vpack.c.bf16 %v1571, %v1569
        %v1614 = vpack.c.bf16 %v1572, %v1570
        %v1615 = vpack.c.bf16 %v1575, %v1573
        %v1616 = vpack.c.bf16 %v1576, %v1574
        %v1617 = vpack.c.bf16 %v1579, %v1577
        %v1618 = vpack.c.bf16 %v1580, %v1578
        %v1619 = vpack.c.bf16 %v1583, %v1581
        %v1620 = vpack.c.bf16 %v1584, %v1582
        %v1621 = vpack.c.bf16 %v1587, %v1585
        %v1622 = vpack.c.bf16 %v1588, %v1586
        %v1623 = vpack.c.bf16 %v1591, %v1589
        %v1624 = vpack.c.bf16 %v1592, %v1590
        %v1657 = vunpack.c.l.b16 %v1593
        %v1658 = vunpack.c.l.b16 %v1594
        %v1659 = vunpack.c.h.b16 %v1593
        %v1660 = vunpack.c.h.b16 %v1594
        %v1661 = vunpack.c.l.b16 %v1595
        %v1662 = vunpack.c.l.b16 %v1596
        %v1663 = vunpack.c.h.b16 %v1595
        %v1664 = vunpack.c.h.b16 %v1596
        %v1665 = vunpack.c.l.b16 %v1597
        %v1666 = vunpack.c.l.b16 %v1598
        %v1667 = vunpack.c.h.b16 %v1597
        %v1668 = vunpack.c.h.b16 %v1598
        %v1669 = vunpack.c.l.b16 %v1599
        %v1670 = vunpack.c.l.b16 %v1600
        %v1671 = vunpack.c.h.b16 %v1599
        %v1672 = vunpack.c.h.b16 %v1600
        %v1673 = vunpack.c.l.b16 %v1601
        %v1674 = vunpack.c.l.b16 %v1602
        %v1675 = vunpack.c.h.b16 %v1601
        %v1676 = vunpack.c.h.b16 %v1602
        %v1677 = vunpack.c.l.b16 %v1603
        %v1678 = vunpack.c.l.b16 %v1604
        %v1679 = vunpack.c.h.b16 %v1603
        %v1680 = vunpack.c.h.b16 %v1604
        %v1681 = vunpack.c.l.b16 %v1605
        %v1682 = vunpack.c.l.b16 %v1606
        %v1683 = vunpack.c.h.b16 %v1605
        %v1684 = vunpack.c.h.b16 %v1606
        %v1685 = vunpack.c.l.b16 %v1607
        %v1686 = vunpack.c.l.b16 %v1608
        %v1687 = vunpack.c.h.b16 %v1607
        %v1688 = vunpack.c.h.b16 %v1608
        %v1689 = vunpack.c.l.b16 %v1609
        %v1690 = vunpack.c.l.b16 %v1610
        %v1691 = vunpack.c.h.b16 %v1609
        %v1692 = vunpack.c.h.b16 %v1610
        %v1693 = vunpack.c.l.b16 %v1611
        %v1694 = vunpack.c.l.b16 %v1612
        %v1695 = vunpack.c.h.b16 %v1611
        %v1696 = vunpack.c.h.b16 %v1612
        %v1697 = vunpack.c.l.b16 %v1613
        %v1698 = vunpack.c.l.b16 %v1614
        %v1699 = vunpack.c.h.b16 %v1613
        %v1700 = vunpack.c.h.b16 %v1614
        %v1701 = vunpack.c.l.b16 %v1615
        %v1702 = vunpack.c.l.b16 %v1616
        %v1703 = vunpack.c.h.b16 %v1615
        %v1704 = vunpack.c.h.b16 %v1616
        %v1705 = vunpack.c.l.b16 %v1617
        %v1706 = vunpack.c.l.b16 %v1618
        %v1707 = vunpack.c.h.b16 %v1617
        %v1708 = vunpack.c.h.b16 %v1618
        %v1709 = vunpack.c.l.b16 %v1619
        %v1710 = vunpack.c.l.b16 %v1620
        %v1711 = vunpack.c.h.b16 %v1619
        %v1712 = vunpack.c.h.b16 %v1620
        %v1713 = vunpack.c.l.b16 %v1621
        %v1714 = vunpack.c.l.b16 %v1622
        %v1715 = vunpack.c.h.b16 %v1621
        %v1716 = vunpack.c.h.b16 %v1622
        %v1717 = vunpack.c.l.b16 %v1623
        %v1718 = vunpack.c.l.b16 %v1624
        %v1719 = vunpack.c.h.b16 %v1623
        %v1720 = vunpack.c.h.b16 %v1624
        %v1721 = vpack.c.b16 %v1658, %v1657
        %v1722 = vpack.c.b16 %v1660, %v1659
        %v1723 = vpack.c.b16 %v1662, %v1661
        %v1724 = vpack.c.b16 %v1664, %v1663
        %v1725 = vpack.c.b16 %v1666, %v1665
        %v1726 = vpack.c.b16 %v1668, %v1667
        %v1727 = vpack.c.b16 %v1670, %v1669
        %v1728 = vpack.c.b16 %v1672, %v1671
        %v1729 = vpack.c.b16 %v1674, %v1673
        %v1730 = vpack.c.b16 %v1676, %v1675
        %v1731 = vpack.c.b16 %v1678, %v1677
        %v1732 = vpack.c.b16 %v1680, %v1679
        %v1733 = vpack.c.b16 %v1682, %v1681
        %v1734 = vpack.c.b16 %v1684, %v1683
        %v1735 = vpack.c.b16 %v1686, %v1685
        %v1736 = vpack.c.b16 %v1688, %v1687
        %v1737 = vpack.c.b16 %v1690, %v1689
        %v1738 = vpack.c.b16 %v1692, %v1691
        %v1739 = vpack.c.b16 %v1694, %v1693
        %v1740 = vpack.c.b16 %v1696, %v1695
        %v1741 = vpack.c.b16 %v1698, %v1697
        %v1742 = vpack.c.b16 %v1700, %v1699
        %v1743 = vpack.c.b16 %v1702, %v1701
        %v1744 = vpack.c.b16 %v1704, %v1703
        %v1745 = vpack.c.b16 %v1706, %v1705
        %v1746 = vpack.c.b16 %v1708, %v1707
        %v1747 = vpack.c.b16 %v1710, %v1709
        %v1748 = vpack.c.b16 %v1712, %v1711
        %v1749 = vpack.c.b16 %v1714, %v1713
        %v1750 = vpack.c.b16 %v1716, %v1715
        %v1751 = vpack.c.b16 %v1718, %v1717
        %v1752 = vpack.c.b16 %v1720, %v1719
        %1785 = vst [vmem:[%s272] sm:$0xff] %v1721
        %1786 = vst [vmem:[%s272 + $0x8] sm:$0xff] %v1722
        %1787 = vst [vmem:[%s272 + $0x10] sm:$0xff] %v1723
        %1788 = vst [vmem:[%s272 + $0x18] sm:$0xff] %v1724
        %1789 = vst [vmem:[%s272 + $0x20] sm:$0xff] %v1725
        %1790 = vst [vmem:[%s272 + $0x28] sm:$0xff] %v1726
        %1791 = vst [vmem:[%s272 + $0x30] sm:$0xff] %v1727
        %1792 = vst [vmem:[%s272 + $0x38] sm:$0xff] %v1728
        %1793 = vst [vmem:[%s272 + $0x40] sm:$0xff] %v1729
        %1794 = vst [vmem:[%s272 + $0x48] sm:$0xff] %v1730
        %1795 = vst [vmem:[%s272 + $0x50] sm:$0xff] %v1731
        %1796 = vst [vmem:[%s272 + $0x58] sm:$0xff] %v1732
        %1797 = vst [vmem:[%s272 + $0x60] sm:$0xff] %v1733
        %1798 = vst [vmem:[%s272 + $0x68] sm:$0xff] %v1734
        %1799 = vst [vmem:[%s272 + $0x70] sm:$0xff] %v1735
        %1800 = vst [vmem:[%s272 + $0x78] sm:$0xff] %v1736
        %1801 = vst [vmem:[%s272 + $0x80] sm:$0xff] %v1737
        %1802 = vst [vmem:[%s272 + $0x88] sm:$0xff] %v1738
        %1803 = vst [vmem:[%s272 + $0x90] sm:$0xff] %v1739
        %1804 = vst [vmem:[%s272 + $0x98] sm:$0xff] %v1740
        %1805 = vst [vmem:[%s272 + $0xa0] sm:$0xff] %v1741
        %1806 = vst [vmem:[%s272 + $0xa8] sm:$0xff] %v1742
        %1807 = vst [vmem:[%s272 + $0xb0] sm:$0xff] %v1743
        %1808 = vst [vmem:[%s272 + $0xb8] sm:$0xff] %v1744
        %1809 = vst [vmem:[%s272 + $0xc0] sm:$0xff] %v1745
        %1810 = vst [vmem:[%s272 + $0xc8] sm:$0xff] %v1746
        %1811 = vst [vmem:[%s272 + $0xd0] sm:$0xff] %v1747
        %1812 = vst [vmem:[%s272 + $0xd8] sm:$0xff] %v1748
        %1813 = vst [vmem:[%s272 + $0xe0] sm:$0xff] %v1749
        %1814 = vst [vmem:[%s272 + $0xe8] sm:$0xff] %v1750
        %1815 = vst [vmem:[%s272 + $0xf0] sm:$0xff] %v1751
        %1816 = vst [vmem:[%s272 + $0xf8] sm:$0xff] %v1752
        %s1817 = sand.u32 %s141, 1
        %s1818 = scalar_lea.sflag [#allocation4], %s1817
        %s1819 = sand.u32 %s141, 1
        %s1820 = smul.addr %s1819, 256
        %s1821 = scalar_lea.vmem [#allocation8], %s1820
        // Predicated region
        $region53: #{tpu_custom_call.1} parent=39 // pred_check
          %p1822 = pneg %p151
        $region54: #{tpu_custom_call.1} parent=39 // pred_check_branch
          %1824 = sbr.rel (%p1822) target = $region56
        $region55: #{tpu_custom_call.1} parent=39 // pred_region
          %s1825 = smul.u32 32, %s23
          %s1827 = ssub.s32 4096, 4096
          %1828 = vsyncadd %s1818, %s1827
          %s1829 = smul.addr %s1825, 2
          %s1830 = smul.addr %s1829, 64
          %s1831 = scalar_lea.hbm %s5, %s1830
          %s1832 = sshll.u32 %s1821, 4
          %s1833 = int_to_ptr.vmem [resolvable:$true] %s1832
          %1838 = dma.vmem_to_hbm [thread:$0]  %s1833, 4096, %s1831, %s1818, 128, 128, 8
        $region56: #{tpu_custom_call.1} parent=39 // pred_fallthru
          _
      $region40: #{tpu_custom_call.1} parent=5 // pred_fallthru
        _
      %p1839 = scmp.le.s32.totalorder 2, %s18
      // Predicated region
      $region57: #{tpu_custom_call.1} parent=5 // pred_check
        %p1840 = pneg %p1839
      $region58: #{tpu_custom_call.1} parent=5 // pred_check_branch
        %1842 = sbr.rel (%p1840) target = $region60
      $region59: #{tpu_custom_call.1} parent=5 // pred_region
        %s1843 = ssub.s32 %s18, 2
        // Predicated region
        $region61: #{tpu_custom_call.1} parent=59 // pred_check
          %p1844 = pneg %p157
        $region62: #{tpu_custom_call.1} parent=59 // pred_check_branch
          %1846 = sbr.rel (%p1844) target = $region64
        $region63: #{tpu_custom_call.1} parent=59 // pred_region
          %s1847 = sand.u32 %s142, 1
          %s1848 = scalar_lea.sflag [#allocation4], %s1847
          %s1849 = sand.u32 %s142, 1
          %s1850 = smul.addr %s1849, 256
          %s1851 = scalar_lea.vmem [#allocation8], %s1850
          %1852 = dma.done %s1848, 4096
        $region64: #{tpu_custom_call.1} parent=59 // pred_fallthru
          _
      $region60: #{tpu_custom_call.1} parent=5 // pred_fallthru
        _
    $region6: #{tpu_custom_call.1} parent=1 // loop_footer
      %s22 = sadd.s32 1, %s18
    $region7: #{tpu_custom_call.1} parent=1 // loop_footer_branch
      %17 = sbr.rel target = $region3
    $region8: #{tpu_custom_call.1} parent=1 // loop_exit
      _
    %1853 = vsyncpa [#allocation3], 1
    %s1854 = scalar_lea.sflag [#allocation3], 1
    %1855 = vsyncpa %s1854, 1
    %1856 = vsyncpa [#allocation6], 1
    %1857 = vsyncpa [#allocation4], 1
    %s1858 = scalar_lea.sflag [#allocation4], 1
    %1859 = vsyncpa %s1858, 1

</llo_original>
